<compile_context>
chip_gen: v7x
topology: tpu7x:2x2x1
jax: 0.10.0
libtpu: 0.0.40
codegen_flags: <defaults>
</compile_context>

<pallas_src>
import jax
import jax.numpy as jnp
from jax.experimental import pallas as pl
from jax.experimental.pallas import tpu as pltpu

# ---- "config" / vocab constants (chat_word_sequence_model stand-in) ---------
VOCAB_SIZE = 32          # len(chat_word_sequence_model)
EMB_DIM = 32             # config.chat_decoder_embedding_dim
HIDDEN = 32              # config.chat_decoder_gru_hidden_size
NUM_LAYERS = 1           # config.chat_gru_num_layers (bidirectional=False)
PAD = 0                  # chat_word_sequence_model.PAD
START = 1                # chat_word_sequence_model.START


def _decoder_kernel(wtop_ref, wbot_ref, wout_ref, bout_ref, h0_ref,
                    out_ref, hfinal_ref):
    """Full greedy decode (all S steps) in one launch.

    wtop_ref : (V, 6H) bf16   [embedding@w_ih + b_ih | b_hh (tiled)]
    wbot_ref : (H, 6H) bf16   [0 | w_hh]
    wout_ref : (H, V)  bf16   output projection
    bout_ref : (1, V)  f32    output bias
    h0_ref   : (1, B, H) f32  encoder hidden state (num_layers = 1)
    out_ref  : (B, S*V) f32   log-softmax outputs, lane-dense, single store
    hfinal_ref : (1, B, H) f32 final hidden state
    """
    _, B, H = h0_ref.shape
    V = wout_ref.shape[1]
    S = out_ref.shape[1] // V

    # ---- loop-invariant values hoisted out of the unrolled decode loop ------
    col = jax.lax.broadcasted_iota(jnp.int32, (B, V), 1)          # (B, V)
    wtop = wtop_ref[...]                                          # (V, 6H) bf16
    wbot = wbot_ref[...]                                          # (H, 6H) bf16
    wout = wout_ref[...]                                          # (H, V)  bf16
    bout = jnp.broadcast_to(bout_ref[...], (B, V))                # (B, V)  f32

    h = h0_ref[0, :, :]                                           # (B, H) f32
    tok = jnp.full((B, 1), START, jnp.int32)                      # (B, 1)

    logps = []
    # Static (fully unrolled) greedy decode loop — one kernel launch total.
    for s in range(S):
        # One-hot of current token (exact in bf16: values are 0.0 / 1.0).
        onehot = (col == tok).astype(jnp.bfloat16)                # (B, V)
        # Two back-to-back MXU pushes, f32 accumulation; VPU add of results.
        g = (jnp.dot(onehot, wtop, preferred_element_type=jnp.float32) +
             jnp.dot(h.astype(jnp.bfloat16), wbot,
                     preferred_element_type=jnp.float32))         # (B, 6H)
        gi = g[:, 0:3 * H]                                        # x@w_ih + b_ih
        gh = g[:, 3 * H:6 * H]                                    # h@w_hh + b_hh

        # PyTorch GRU gate ordering: r, z, n (all gate math in f32).
        r = jax.nn.sigmoid(gi[:, 0:H] + gh[:, 0:H])
        z = jax.nn.sigmoid(gi[:, H:2 * H] + gh[:, H:2 * H])
        n = jnp.tanh(gi[:, 2 * H:3 * H] + r * gh[:, 2 * H:3 * H])
        h = (1.0 - z) * n + z * h                                 # (B, H) f32

        # Output projection (bf16 MXU operands, f32 accumulate + bias).
        logits = jnp.dot(h.astype(jnp.bfloat16), wout,
                         preferred_element_type=jnp.float32) + bout   # (B, V)

        # Greedy next token from raw logits (log_softmax is monotone, so this
        # matches torch.topk(log_softmax, k=1)); keeps the log-softmax + store
        # off the serial critical path.
        if s + 1 < S:
            tok = jnp.argmax(logits, axis=-1).astype(jnp.int32)[:, None]

        # log_softmax (max-stabilized, f32) — only feeds the output.
        m = jnp.max(logits, axis=-1, keepdims=True)
        lse = jnp.log(jnp.sum(jnp.exp(logits - m), axis=-1, keepdims=True)) + m
        logps.append(logits - lse)                                # (B, V)

    # Single lane-dense output store (B, S*V); wrapper reshape is free.
    out_ref[...] = jnp.concatenate(logps, axis=1)
    hfinal_ref[0, :, :] = h


class ChatDecoderPallas:
    """Deterministically initialized parameters + Pallas forward."""

    def __init__(self, key):
        ks = jax.random.split(key, 8)
        bound = 1.0 / jnp.sqrt(HIDDEN)

        emb = jax.random.normal(ks[0], (VOCAB_SIZE, EMB_DIM), jnp.float32)
        emb = emb.at[PAD].set(0.0)                      # padding_idx => zero row
        self.embedding = emb

        # PyTorch GRU weights are [3H, in]; store transposed for x @ W.
        self.w_ih = jax.random.uniform(ks[1], (EMB_DIM, 3 * HIDDEN),
                                       jnp.float32, -bound, bound)
        self.w_hh = jax.random.uniform(ks[2], (HIDDEN, 3 * HIDDEN),
                                       jnp.float32, -bound, bound)
        self.b_ih = jax.random.uniform(ks[3], (1, 3 * HIDDEN),
                                       jnp.float32, -bound, bound)
        self.b_hh = jax.random.uniform(ks[4], (1, 3 * HIDDEN),
                                       jnp.float32, -bound, bound)

        self.w_out = jax.random.uniform(ks[5], (HIDDEN, VOCAB_SIZE),
                                        jnp.float32, -bound, bound)
        self.b_out = jax.random.uniform(ks[6], (1, VOCAB_SIZE),
                                        jnp.float32, -bound, bound)

        # One-time weight preprocessing (init-time, not per-forward):
        #   onehot @ w_top + h @ w_bot == [ x@w_ih + b_ih  |  h@w_hh + b_hh ]
        # because each one-hot row picks one row of (emb@w_ih + b_ih) and sums
        # to 1 so it also picks up one copy of b_hh.
        ew = self.embedding @ self.w_ih + self.b_ih            # (V, 3H)
        bhh_rows = jnp.tile(self.b_hh, (VOCAB_SIZE, 1))        # (V, 3H)
        self.w_top = jnp.concatenate([ew, bhh_rows], axis=1)   # (V, 6H)
        self.w_bot = jnp.concatenate(
            [jnp.zeros((HIDDEN, 3 * HIDDEN), jnp.float32), self.w_hh],
            axis=1)                                            # (H, 6H)

        # MXU operand precision: bf16 inputs, f32 accumulation in-kernel.
        self.w_top_bf = self.w_top.astype(jnp.bfloat16)
        self.w_bot_bf = self.w_bot.astype(jnp.bfloat16)
        self.w_out_bf = self.w_out.astype(jnp.bfloat16)

    def __call__(self, encoder_outputs, encoder_hidden_state, decoder_label):
        # encoder_outputs is unused by this decoder (no attention), as in torch.
        # decoder_label contributes only its shape (greedy decode, no teacher
        # forcing), matching the torch forward().
        del encoder_outputs
        B, S = decoder_label.shape

        vmem = pl.BlockSpec(memory_space=pltpu.MemorySpace.VMEM)
        out_flat, decoder_hidden_state = pl.pallas_call(
            _decoder_kernel,
            out_shape=(
                jax.ShapeDtypeStruct((B, S * VOCAB_SIZE), jnp.float32),
                jax.ShapeDtypeStruct((NUM_LAYERS, B, HIDDEN), jnp.float32),
            ),
            in_specs=[vmem, vmem, vmem, vmem, vmem],
            out_specs=(vmem, vmem),
        )(self.w_top_bf, self.w_bot_bf, self.w_out_bf, self.b_out,
          encoder_hidden_state)
        # Row-major identical reshape (free) to PyTorch's (B, S, V) layout.
        decoder_outputs = out_flat.reshape(B, S, VOCAB_SIZE)
        # Per review: no dual-TensorCore sharding at B=2; revisit only if
        # production batch size reaches >=16 (>=8 rows per core).
        return decoder_outputs, decoder_hidden_state


# ---------------------------- pure-JAX reference -----------------------------
def _reference(model, encoder_hidden_state, decoder_label):
    """Step-by-step GRU reference built from the raw (unfolded) parameters,
    using the same matmul operand precision as the kernel (bf16 inputs,
    f32 accumulation) so greedy token selection cannot diverge on near-ties."""
    B, S = decoder_label.shape
    H = HIDDEN
    ew_bf = (model.embedding @ model.w_ih + model.b_ih).astype(jnp.bfloat16)
    whh_bf = model.w_hh.astype(jnp.bfloat16)
    wout_bf = model.w_out.astype(jnp.bfloat16)
    bhh = model.b_hh.astype(jnp.bfloat16).astype(jnp.float32)
    h = encoder_hidden_state[0]
    tok = jnp.full((B,), START, jnp.int32)
    outs = []
    for _ in range(S):
        gi = ew_bf[tok].astype(jnp.float32)                       # (B, 3H)
        gh = jnp.dot(h.astype(jnp.bfloat16), whh_bf,
                     preferred_element_type=jnp.float32) + bhh    # (B, 3H)
        r = jax.nn.sigmoid(gi[:, :H] + gh[:, :H])
        z = jax.nn.sigmoid(gi[:, H:2 * H] + gh[:, H:2 * H])
        n = jnp.tanh(gi[:, 2 * H:] + r * gh[:, 2 * H:])
        h = (1.0 - z) * n + z * h
        logits = jnp.dot(h.astype(jnp.bfloat16), wout_bf,
                         preferred_element_type=jnp.float32) + model.b_out
        logp = jax.nn.log_softmax(logits, axis=-1)
        outs.append(logp)
        tok = jnp.argmax(logits, axis=-1).astype(jnp.int32)
    return jnp.stack(outs, axis=1), h[None]


if __name__ == "__main__":
    key = jax.random.PRNGKey(0)
    k_param, k_enc, k_hid = jax.random.split(key, 3)

    B, S, SRC_LEN = 2, 8, 8
    model = ChatDecoderPallas(k_param)

    encoder_outputs = jax.random.normal(k_enc, (B, SRC_LEN, HIDDEN), jnp.float32)
    encoder_hidden_state = jax.random.normal(k_hid, (NUM_LAYERS, B, HIDDEN),
                                             jnp.float32)
    decoder_label = jnp.zeros((B, S), jnp.int32)   # only its shape is used

    dec_out, dec_hid = model(encoder_outputs, encoder_hidden_state, decoder_label)
    dec_out = jax.block_until_ready(dec_out)
    dec_hid = jax.block_until_ready(dec_hid)

    ref_out, ref_hid = _reference(model, encoder_hidden_state, decoder_label)
    assert dec_out.shape == (B, S, VOCAB_SIZE)
    assert dec_hid.shape == (NUM_LAYERS, B, HIDDEN)
    assert jnp.allclose(dec_out, ref_out, atol=1e-4, rtol=1e-4)
    assert jnp.allclose(dec_hid, ref_hid, atol=1e-4, rtol=1e-4)

    print("KERNEL_OK")
</pallas_src>

<mosaic_0001>
module attributes {stable_mosaic.version = 11 : i64} {
  func.func @_decoder_kernel(%arg0: memref<32x192xbf16, #tpu.memory_space<vmem>>, %arg1: memref<32x192xbf16, #tpu.memory_space<vmem>>, %arg2: memref<32x32xbf16, #tpu.memory_space<vmem>>, %arg3: memref<1x32xf32, #tpu.memory_space<vmem>>, %arg4: memref<1x2x32xf32, #tpu.memory_space<vmem>>, %arg5: memref<2x256xf32, #tpu.memory_space<vmem>>, %arg6: memref<1x2x32xf32, #tpu.memory_space<vmem>>) attributes {dimension_semantics = [], scalar_prefetch = 0 : i64, scratch_operands = 0 : i64, tpu.core_type = #tpu.core_type<tc>} {
    %0 = tpu.iota {dimensions = array<i32: 1>} : vector<2x32xi32>
    %c0 = arith.constant 0 : index
    %c0_0 = arith.constant 0 : index
    %1 = vector.load %arg0[%c0, %c0_0] : memref<32x192xbf16, #tpu.memory_space<vmem>>, vector<32x192xbf16>
    %c0_1 = arith.constant 0 : index
    %c0_2 = arith.constant 0 : index
    %2 = vector.load %arg1[%c0_1, %c0_2] : memref<32x192xbf16, #tpu.memory_space<vmem>>, vector<32x192xbf16>
    %c0_3 = arith.constant 0 : index
    %c0_4 = arith.constant 0 : index
    %3 = vector.load %arg2[%c0_3, %c0_4] : memref<32x32xbf16, #tpu.memory_space<vmem>>, vector<32x32xbf16>
    %c0_5 = arith.constant 0 : index
    %c0_6 = arith.constant 0 : index
    %4 = vector.load %arg3[%c0_5, %c0_6] : memref<1x32xf32, #tpu.memory_space<vmem>>, vector<1x32xf32>
    %5 = vector.shape_cast %4 : vector<1x32xf32> to vector<1x32xf32>
    %6 = vector.broadcast %5 : vector<1x32xf32> to vector<2x32xf32>
    %c0_7 = arith.constant 0 : index
    %c0_8 = arith.constant 0 : index
    %c0_9 = arith.constant 0 : index
    %7 = vector.load %arg4[%c0_7, %c0_8, %c0_9] : memref<1x2x32xf32, #tpu.memory_space<vmem>>, vector<1x2x32xf32>
    %8 = vector.shape_cast %7 : vector<1x2x32xf32> to vector<2x32xf32>
    %c1_i32 = arith.constant 1 : i32
    %9 = vector.broadcast %c1_i32 : i32 to vector<2x1xi32>
    %10 = vector.broadcast %9 : vector<2x1xi32> to vector<2x32xi32>
    %11 = arith.cmpi eq, %0, %10 : vector<2x32xi32>
    %12 = arith.extui %11 : vector<2x32xi1> to vector<2x32xi32>
    %13 = arith.sitofp %12 : vector<2x32xi32> to vector<2x32xf32>
    %14 = arith.truncf %13 : vector<2x32xf32> to vector<2x32xbf16>
    %cst = arith.constant dense<0.000000e+00> : vector<2x192xf32>
    %15 = tpu.matmul %14, %1, %cst {dimension_numbers = #tpu.dot_dimension_numbers<[1], [0], [0], [1], [0, 0, 1, 1], [], []>} : vector<2x32xbf16>, vector<32x192xbf16>, vector<2x192xf32> -> vector<2x192xf32>
    %16 = arith.truncf %8 : vector<2x32xf32> to vector<2x32xbf16>
    %cst_10 = arith.constant dense<0.000000e+00> : vector<2x192xf32>
    %17 = tpu.matmul %16, %2, %cst_10 {dimension_numbers = #tpu.dot_dimension_numbers<[1], [0], [0], [1], [0, 0, 1, 1], [], []>} : vector<2x32xbf16>, vector<32x192xbf16>, vector<2x192xf32> -> vector<2x192xf32>
    %18 = arith.addf %15, %17 : vector<2x192xf32>
    %19 = vector.extract_strided_slice %18 {offsets = [0, 0], sizes = [2, 96], strides = [1, 1]} : vector<2x192xf32> to vector<2x96xf32>
    %20 = vector.extract_strided_slice %18 {offsets = [0, 96], sizes = [2, 96], strides = [1, 1]} : vector<2x192xf32> to vector<2x96xf32>
    %21 = vector.extract_strided_slice %19 {offsets = [0, 0], sizes = [2, 32], strides = [1, 1]} : vector<2x96xf32> to vector<2x32xf32>
    %22 = vector.extract_strided_slice %20 {offsets = [0, 0], sizes = [2, 32], strides = [1, 1]} : vector<2x96xf32> to vector<2x32xf32>
    %23 = arith.addf %21, %22 : vector<2x32xf32>
    %24 = arith.negf %23 : vector<2x32xf32>
    %25 = math.exp %24 : vector<2x32xf32>
    %cst_11 = arith.constant 1.000000e+00 : f32
    %26 = vector.broadcast %cst_11 : f32 to vector<2x32xf32>
    %27 = arith.addf %26, %25 : vector<2x32xf32>
    %28 = arith.divf %26, %27 : vector<2x32xf32>
    %29 = vector.extract_strided_slice %19 {offsets = [0, 32], sizes = [2, 32], strides = [1, 1]} : vector<2x96xf32> to vector<2x32xf32>
    %30 = vector.extract_strided_slice %20 {offsets = [0, 32], sizes = [2, 32], strides = [1, 1]} : vector<2x96xf32> to vector<2x32xf32>
    %31 = arith.addf %29, %30 : vector<2x32xf32>
    %32 = arith.negf %31 : vector<2x32xf32>
    %33 = math.exp %32 : vector<2x32xf32>
    %cst_12 = arith.constant 1.000000e+00 : f32
    %34 = vector.broadcast %cst_12 : f32 to vector<2x32xf32>
    %35 = arith.addf %34, %33 : vector<2x32xf32>
    %36 = arith.divf %34, %35 : vector<2x32xf32>
    %37 = vector.extract_strided_slice %19 {offsets = [0, 64], sizes = [2, 32], strides = [1, 1]} : vector<2x96xf32> to vector<2x32xf32>
    %38 = vector.extract_strided_slice %20 {offsets = [0, 64], sizes = [2, 32], strides = [1, 1]} : vector<2x96xf32> to vector<2x32xf32>
    %39 = arith.mulf %28, %38 : vector<2x32xf32>
    %40 = arith.addf %37, %39 : vector<2x32xf32>
    %41 = math.tanh %40 : vector<2x32xf32>
    %cst_13 = arith.constant 1.000000e+00 : f32
    %42 = vector.broadcast %cst_13 : f32 to vector<2x32xf32>
    %43 = arith.subf %42, %36 : vector<2x32xf32>
    %44 = arith.mulf %43, %41 : vector<2x32xf32>
    %45 = arith.mulf %36, %8 : vector<2x32xf32>
    %46 = arith.addf %44, %45 : vector<2x32xf32>
    %47 = arith.truncf %46 : vector<2x32xf32> to vector<2x32xbf16>
    %cst_14 = arith.constant dense<0.000000e+00> : vector<2x32xf32>
    %48 = tpu.matmul %47, %3, %cst_14 {dimension_numbers = #tpu.dot_dimension_numbers<[1], [0], [0], [1], [0, 0, 1, 1], [], []>} : vector<2x32xbf16>, vector<32x32xbf16>, vector<2x32xf32> -> vector<2x32xf32>
    %49 = arith.addf %48, %6 : vector<2x32xf32>
    %50 = tpu.reduce_index %49 {axis = 1 : i32, kind = #tpu.reduction_kind<arg_max>} : vector<2x32xf32> -> vector<2xi32>
    %51 = vector.shape_cast %50 : vector<2xi32> to vector<2x1xi32>
    %cst_15 = arith.constant dense<0xFF800000> : vector<2xf32>
    %52 = vector.multi_reduction <maximumf>, %49, %cst_15 [1] : vector<2x32xf32> to vector<2xf32>
    %53 = vector.shape_cast %52 : vector<2xf32> to vector<2x1xf32>
    %54 = vector.broadcast %53 : vector<2x1xf32> to vector<2x32xf32>
    %55 = arith.subf %49, %54 : vector<2x32xf32>
    %56 = math.exp %55 : vector<2x32xf32>
    %cst_16 = arith.constant dense<0.000000e+00> : vector<2xf32>
    %57 = vector.multi_reduction <add>, %56, %cst_16 [1] : vector<2x32xf32> to vector<2xf32>
    %58 = vector.shape_cast %57 : vector<2xf32> to vector<2x1xf32>
    %59 = math.log %58 : vector<2x1xf32>
    %60 = arith.addf %59, %53 : vector<2x1xf32>
    %61 = vector.broadcast %60 : vector<2x1xf32> to vector<2x32xf32>
    %62 = arith.subf %49, %61 : vector<2x32xf32>
    %63 = vector.broadcast %51 : vector<2x1xi32> to vector<2x32xi32>
    %64 = arith.cmpi eq, %0, %63 : vector<2x32xi32>
    %65 = arith.extui %64 : vector<2x32xi1> to vector<2x32xi32>
    %66 = arith.sitofp %65 : vector<2x32xi32> to vector<2x32xf32>
    %67 = arith.truncf %66 : vector<2x32xf32> to vector<2x32xbf16>
    %cst_17 = arith.constant dense<0.000000e+00> : vector<2x192xf32>
    %68 = tpu.matmul %67, %1, %cst_17 {dimension_numbers = #tpu.dot_dimension_numbers<[1], [0], [0], [1], [0, 0, 1, 1], [], []>} : vector<2x32xbf16>, vector<32x192xbf16>, vector<2x192xf32> -> vector<2x192xf32>
    %69 = arith.truncf %46 : vector<2x32xf32> to vector<2x32xbf16>
    %cst_18 = arith.constant dense<0.000000e+00> : vector<2x192xf32>
    %70 = tpu.matmul %69, %2, %cst_18 {dimension_numbers = #tpu.dot_dimension_numbers<[1], [0], [0], [1], [0, 0, 1, 1], [], []>} : vector<2x32xbf16>, vector<32x192xbf16>, vector<2x192xf32> -> vector<2x192xf32>
    %71 = arith.addf %68, %70 : vector<2x192xf32>
    %72 = vector.extract_strided_slice %71 {offsets = [0, 0], sizes = [2, 96], strides = [1, 1]} : vector<2x192xf32> to vector<2x96xf32>
    %73 = vector.extract_strided_slice %71 {offsets = [0, 96], sizes = [2, 96], strides = [1, 1]} : vector<2x192xf32> to vector<2x96xf32>
    %74 = vector.extract_strided_slice %72 {offsets = [0, 0], sizes = [2, 32], strides = [1, 1]} : vector<2x96xf32> to vector<2x32xf32>
    %75 = vector.extract_strided_slice %73 {offsets = [0, 0], sizes = [2, 32], strides = [1, 1]} : vector<2x96xf32> to vector<2x32xf32>
    %76 = arith.addf %74, %75 : vector<2x32xf32>
    %77 = arith.negf %76 : vector<2x32xf32>
    %78 = math.exp %77 : vector<2x32xf32>
    %cst_19 = arith.constant 1.000000e+00 : f32
    %79 = vector.broadcast %cst_19 : f32 to vector<2x32xf32>
    %80 = arith.addf %79, %78 : vector<2x32xf32>
    %81 = arith.divf %79, %80 : vector<2x32xf32>
    %82 = vector.extract_strided_slice %72 {offsets = [0, 32], sizes = [2, 32], strides = [1, 1]} : vector<2x96xf32> to vector<2x32xf32>
    %83 = vector.extract_strided_slice %73 {offsets = [0, 32], sizes = [2, 32], strides = [1, 1]} : vector<2x96xf32> to vector<2x32xf32>
    %84 = arith.addf %82, %83 : vector<2x32xf32>
    %85 = arith.negf %84 : vector<2x32xf32>
    %86 = math.exp %85 : vector<2x32xf32>
    %cst_20 = arith.constant 1.000000e+00 : f32
    %87 = vector.broadcast %cst_20 : f32 to vector<2x32xf32>
    %88 = arith.addf %87, %86 : vector<2x32xf32>
    %89 = arith.divf %87, %88 : vector<2x32xf32>
    %90 = vector.extract_strided_slice %72 {offsets = [0, 64], sizes = [2, 32], strides = [1, 1]} : vector<2x96xf32> to vector<2x32xf32>
    %91 = vector.extract_strided_slice %73 {offsets = [0, 64], sizes = [2, 32], strides = [1, 1]} : vector<2x96xf32> to vector<2x32xf32>
    %92 = arith.mulf %81, %91 : vector<2x32xf32>
    %93 = arith.addf %90, %92 : vector<2x32xf32>
    %94 = math.tanh %93 : vector<2x32xf32>
    %cst_21 = arith.constant 1.000000e+00 : f32
    %95 = vector.broadcast %cst_21 : f32 to vector<2x32xf32>
    %96 = arith.subf %95, %89 : vector<2x32xf32>
    %97 = arith.mulf %96, %94 : vector<2x32xf32>
    %98 = arith.mulf %89, %46 : vector<2x32xf32>
    %99 = arith.addf %97, %98 : vector<2x32xf32>
    %100 = arith.truncf %99 : vector<2x32xf32> to vector<2x32xbf16>
    %cst_22 = arith.constant dense<0.000000e+00> : vector<2x32xf32>
    %101 = tpu.matmul %100, %3, %cst_22 {dimension_numbers = #tpu.dot_dimension_numbers<[1], [0], [0], [1], [0, 0, 1, 1], [], []>} : vector<2x32xbf16>, vector<32x32xbf16>, vector<2x32xf32> -> vector<2x32xf32>
    %102 = arith.addf %101, %6 : vector<2x32xf32>
    %103 = tpu.reduce_index %102 {axis = 1 : i32, kind = #tpu.reduction_kind<arg_max>} : vector<2x32xf32> -> vector<2xi32>
    %104 = vector.shape_cast %103 : vector<2xi32> to vector<2x1xi32>
    %cst_23 = arith.constant dense<0xFF800000> : vector<2xf32>
    %105 = vector.multi_reduction <maximumf>, %102, %cst_23 [1] : vector<2x32xf32> to vector<2xf32>
    %106 = vector.shape_cast %105 : vector<2xf32> to vector<2x1xf32>
    %107 = vector.broadcast %106 : vector<2x1xf32> to vector<2x32xf32>
    %108 = arith.subf %102, %107 : vector<2x32xf32>
    %109 = math.exp %108 : vector<2x32xf32>
    %cst_24 = arith.constant dense<0.000000e+00> : vector<2xf32>
    %110 = vector.multi_reduction <add>, %109, %cst_24 [1] : vector<2x32xf32> to vector<2xf32>
    %111 = vector.shape_cast %110 : vector<2xf32> to vector<2x1xf32>
    %112 = math.log %111 : vector<2x1xf32>
    %113 = arith.addf %112, %106 : vector<2x1xf32>
    %114 = vector.broadcast %113 : vector<2x1xf32> to vector<2x32xf32>
    %115 = arith.subf %102, %114 : vector<2x32xf32>
    %116 = vector.broadcast %104 : vector<2x1xi32> to vector<2x32xi32>
    %117 = arith.cmpi eq, %0, %116 : vector<2x32xi32>
    %118 = arith.extui %117 : vector<2x32xi1> to vector<2x32xi32>
    %119 = arith.sitofp %118 : vector<2x32xi32> to vector<2x32xf32>
    %120 = arith.truncf %119 : vector<2x32xf32> to vector<2x32xbf16>
    %cst_25 = arith.constant dense<0.000000e+00> : vector<2x192xf32>
    %121 = tpu.matmul %120, %1, %cst_25 {dimension_numbers = #tpu.dot_dimension_numbers<[1], [0], [0], [1], [0, 0, 1, 1], [], []>} : vector<2x32xbf16>, vector<32x192xbf16>, vector<2x192xf32> -> vector<2x192xf32>
    %122 = arith.truncf %99 : vector<2x32xf32> to vector<2x32xbf16>
    %cst_26 = arith.constant dense<0.000000e+00> : vector<2x192xf32>
    %123 = tpu.matmul %122, %2, %cst_26 {dimension_numbers = #tpu.dot_dimension_numbers<[1], [0], [0], [1], [0, 0, 1, 1], [], []>} : vector<2x32xbf16>, vector<32x192xbf16>, vector<2x192xf32> -> vector<2x192xf32>
    %124 = arith.addf %121, %123 : vector<2x192xf32>
    %125 = vector.extract_strided_slice %124 {offsets = [0, 0], sizes = [2, 96], strides = [1, 1]} : vector<2x192xf32> to vector<2x96xf32>
    %126 = vector.extract_strided_slice %124 {offsets = [0, 96], sizes = [2, 96], strides = [1, 1]} : vector<2x192xf32> to vector<2x96xf32>
    %127 = vector.extract_strided_slice %125 {offsets = [0, 0], sizes = [2, 32], strides = [1, 1]} : vector<2x96xf32> to vector<2x32xf32>
    %128 = vector.extract_strided_slice %126 {offsets = [0, 0], sizes = [2, 32], strides = [1, 1]} : vector<2x96xf32> to vector<2x32xf32>
    %129 = arith.addf %127, %128 : vector<2x32xf32>
    %130 = arith.negf %129 : vector<2x32xf32>
    %131 = math.exp %130 : vector<2x32xf32>
    %cst_27 = arith.constant 1.000000e+00 : f32
    %132 = vector.broadcast %cst_27 : f32 to vector<2x32xf32>
    %133 = arith.addf %132, %131 : vector<2x32xf32>
    %134 = arith.divf %132, %133 : vector<2x32xf32>
    %135 = vector.extract_strided_slice %125 {offsets = [0, 32], sizes = [2, 32], strides = [1, 1]} : vector<2x96xf32> to vector<2x32xf32>
    %136 = vector.extract_strided_slice %126 {offsets = [0, 32], sizes = [2, 32], strides = [1, 1]} : vector<2x96xf32> to vector<2x32xf32>
    %137 = arith.addf %135, %136 : vector<2x32xf32>
    %138 = arith.negf %137 : vector<2x32xf32>
    %139 = math.exp %138 : vector<2x32xf32>
    %cst_28 = arith.constant 1.000000e+00 : f32
    %140 = vector.broadcast %cst_28 : f32 to vector<2x32xf32>
    %141 = arith.addf %140, %139 : vector<2x32xf32>
    %142 = arith.divf %140, %141 : vector<2x32xf32>
    %143 = vector.extract_strided_slice %125 {offsets = [0, 64], sizes = [2, 32], strides = [1, 1]} : vector<2x96xf32> to vector<2x32xf32>
    %144 = vector.extract_strided_slice %126 {offsets = [0, 64], sizes = [2, 32], strides = [1, 1]} : vector<2x96xf32> to vector<2x32xf32>
    %145 = arith.mulf %134, %144 : vector<2x32xf32>
    %146 = arith.addf %143, %145 : vector<2x32xf32>
    %147 = math.tanh %146 : vector<2x32xf32>
    %cst_29 = arith.constant 1.000000e+00 : f32
    %148 = vector.broadcast %cst_29 : f32 to vector<2x32xf32>
    %149 = arith.subf %148, %142 : vector<2x32xf32>
    %150 = arith.mulf %149, %147 : vector<2x32xf32>
    %151 = arith.mulf %142, %99 : vector<2x32xf32>
    %152 = arith.addf %150, %151 : vector<2x32xf32>
    %153 = arith.truncf %152 : vector<2x32xf32> to vector<2x32xbf16>
    %cst_30 = arith.constant dense<0.000000e+00> : vector<2x32xf32>
    %154 = tpu.matmul %153, %3, %cst_30 {dimension_numbers = #tpu.dot_dimension_numbers<[1], [0], [0], [1], [0, 0, 1, 1], [], []>} : vector<2x32xbf16>, vector<32x32xbf16>, vector<2x32xf32> -> vector<2x32xf32>
    %155 = arith.addf %154, %6 : vector<2x32xf32>
    %156 = tpu.reduce_index %155 {axis = 1 : i32, kind = #tpu.reduction_kind<arg_max>} : vector<2x32xf32> -> vector<2xi32>
    %157 = vector.shape_cast %156 : vector<2xi32> to vector<2x1xi32>
    %cst_31 = arith.constant dense<0xFF800000> : vector<2xf32>
    %158 = vector.multi_reduction <maximumf>, %155, %cst_31 [1] : vector<2x32xf32> to vector<2xf32>
    %159 = vector.shape_cast %158 : vector<2xf32> to vector<2x1xf32>
    %160 = vector.broadcast %159 : vector<2x1xf32> to vector<2x32xf32>
    %161 = arith.subf %155, %160 : vector<2x32xf32>
    %162 = math.exp %161 : vector<2x32xf32>
    %cst_32 = arith.constant dense<0.000000e+00> : vector<2xf32>
    %163 = vector.multi_reduction <add>, %162, %cst_32 [1] : vector<2x32xf32> to vector<2xf32>
    %164 = vector.shape_cast %163 : vector<2xf32> to vector<2x1xf32>
    %165 = math.log %164 : vector<2x1xf32>
    %166 = arith.addf %165, %159 : vector<2x1xf32>
    %167 = vector.broadcast %166 : vector<2x1xf32> to vector<2x32xf32>
    %168 = arith.subf %155, %167 : vector<2x32xf32>
    %169 = vector.broadcast %157 : vector<2x1xi32> to vector<2x32xi32>
    %170 = arith.cmpi eq, %0, %169 : vector<2x32xi32>
    %171 = arith.extui %170 : vector<2x32xi1> to vector<2x32xi32>
    %172 = arith.sitofp %171 : vector<2x32xi32> to vector<2x32xf32>
    %173 = arith.truncf %172 : vector<2x32xf32> to vector<2x32xbf16>
    %cst_33 = arith.constant dense<0.000000e+00> : vector<2x192xf32>
    %174 = tpu.matmul %173, %1, %cst_33 {dimension_numbers = #tpu.dot_dimension_numbers<[1], [0], [0], [1], [0, 0, 1, 1], [], []>} : vector<2x32xbf16>, vector<32x192xbf16>, vector<2x192xf32> -> vector<2x192xf32>
    %175 = arith.truncf %152 : vector<2x32xf32> to vector<2x32xbf16>
    %cst_34 = arith.constant dense<0.000000e+00> : vector<2x192xf32>
    %176 = tpu.matmul %175, %2, %cst_34 {dimension_numbers = #tpu.dot_dimension_numbers<[1], [0], [0], [1], [0, 0, 1, 1], [], []>} : vector<2x32xbf16>, vector<32x192xbf16>, vector<2x192xf32> -> vector<2x192xf32>
    %177 = arith.addf %174, %176 : vector<2x192xf32>
    %178 = vector.extract_strided_slice %177 {offsets = [0, 0], sizes = [2, 96], strides = [1, 1]} : vector<2x192xf32> to vector<2x96xf32>
    %179 = vector.extract_strided_slice %177 {offsets = [0, 96], sizes = [2, 96], strides = [1, 1]} : vector<2x192xf32> to vector<2x96xf32>
    %180 = vector.extract_strided_slice %178 {offsets = [0, 0], sizes = [2, 32], strides = [1, 1]} : vector<2x96xf32> to vector<2x32xf32>
    %181 = vector.extract_strided_slice %179 {offsets = [0, 0], sizes = [2, 32], strides = [1, 1]} : vector<2x96xf32> to vector<2x32xf32>
    %182 = arith.addf %180, %181 : vector<2x32xf32>
    %183 = arith.negf %182 : vector<2x32xf32>
    %184 = math.exp %183 : vector<2x32xf32>
    %cst_35 = arith.constant 1.000000e+00 : f32
    %185 = vector.broadcast %cst_35 : f32 to vector<2x32xf32>
    %186 = arith.addf %185, %184 : vector<2x32xf32>
    %187 = arith.divf %185, %186 : vector<2x32xf32>
    %188 = vector.extract_strided_slice %178 {offsets = [0, 32], sizes = [2, 32], strides = [1, 1]} : vector<2x96xf32> to vector<2x32xf32>
    %189 = vector.extract_strided_slice %179 {offsets = [0, 32], sizes = [2, 32], strides = [1, 1]} : vector<2x96xf32> to vector<2x32xf32>
    %190 = arith.addf %188, %189 : vector<2x32xf32>
    %191 = arith.negf %190 : vector<2x32xf32>
    %192 = math.exp %191 : vector<2x32xf32>
    %cst_36 = arith.constant 1.000000e+00 : f32
    %193 = vector.broadcast %cst_36 : f32 to vector<2x32xf32>
    %194 = arith.addf %193, %192 : vector<2x32xf32>
    %195 = arith.divf %193, %194 : vector<2x32xf32>
    %196 = vector.extract_strided_slice %178 {offsets = [0, 64], sizes = [2, 32], strides = [1, 1]} : vector<2x96xf32> to vector<2x32xf32>
    %197 = vector.extract_strided_slice %179 {offsets = [0, 64], sizes = [2, 32], strides = [1, 1]} : vector<2x96xf32> to vector<2x32xf32>
    %198 = arith.mulf %187, %197 : vector<2x32xf32>
    %199 = arith.addf %196, %198 : vector<2x32xf32>
    %200 = math.tanh %199 : vector<2x32xf32>
    %cst_37 = arith.constant 1.000000e+00 : f32
    %201 = vector.broadcast %cst_37 : f32 to vector<2x32xf32>
    %202 = arith.subf %201, %195 : vector<2x32xf32>
    %203 = arith.mulf %202, %200 : vector<2x32xf32>
    %204 = arith.mulf %195, %152 : vector<2x32xf32>
    %205 = arith.addf %203, %204 : vector<2x32xf32>
    %206 = arith.truncf %205 : vector<2x32xf32> to vector<2x32xbf16>
    %cst_38 = arith.constant dense<0.000000e+00> : vector<2x32xf32>
    %207 = tpu.matmul %206, %3, %cst_38 {dimension_numbers = #tpu.dot_dimension_numbers<[1], [0], [0], [1], [0, 0, 1, 1], [], []>} : vector<2x32xbf16>, vector<32x32xbf16>, vector<2x32xf32> -> vector<2x32xf32>
    %208 = arith.addf %207, %6 : vector<2x32xf32>
    %209 = tpu.reduce_index %208 {axis = 1 : i32, kind = #tpu.reduction_kind<arg_max>} : vector<2x32xf32> -> vector<2xi32>
    %210 = vector.shape_cast %209 : vector<2xi32> to vector<2x1xi32>
    %cst_39 = arith.constant dense<0xFF800000> : vector<2xf32>
    %211 = vector.multi_reduction <maximumf>, %208, %cst_39 [1] : vector<2x32xf32> to vector<2xf32>
    %212 = vector.shape_cast %211 : vector<2xf32> to vector<2x1xf32>
    %213 = vector.broadcast %212 : vector<2x1xf32> to vector<2x32xf32>
    %214 = arith.subf %208, %213 : vector<2x32xf32>
    %215 = math.exp %214 : vector<2x32xf32>
    %cst_40 = arith.constant dense<0.000000e+00> : vector<2xf32>
    %216 = vector.multi_reduction <add>, %215, %cst_40 [1] : vector<2x32xf32> to vector<2xf32>
    %217 = vector.shape_cast %216 : vector<2xf32> to vector<2x1xf32>
    %218 = math.log %217 : vector<2x1xf32>
    %219 = arith.addf %218, %212 : vector<2x1xf32>
    %220 = vector.broadcast %219 : vector<2x1xf32> to vector<2x32xf32>
    %221 = arith.subf %208, %220 : vector<2x32xf32>
    %222 = vector.broadcast %210 : vector<2x1xi32> to vector<2x32xi32>
    %223 = arith.cmpi eq, %0, %222 : vector<2x32xi32>
    %224 = arith.extui %223 : vector<2x32xi1> to vector<2x32xi32>
    %225 = arith.sitofp %224 : vector<2x32xi32> to vector<2x32xf32>
    %226 = arith.truncf %225 : vector<2x32xf32> to vector<2x32xbf16>
    %cst_41 = arith.constant dense<0.000000e+00> : vector<2x192xf32>
    %227 = tpu.matmul %226, %1, %cst_41 {dimension_numbers = #tpu.dot_dimension_numbers<[1], [0], [0], [1], [0, 0, 1, 1], [], []>} : vector<2x32xbf16>, vector<32x192xbf16>, vector<2x192xf32> -> vector<2x192xf32>
    %228 = arith.truncf %205 : vector<2x32xf32> to vector<2x32xbf16>
    %cst_42 = arith.constant dense<0.000000e+00> : vector<2x192xf32>
    %229 = tpu.matmul %228, %2, %cst_42 {dimension_numbers = #tpu.dot_dimension_numbers<[1], [0], [0], [1], [0, 0, 1, 1], [], []>} : vector<2x32xbf16>, vector<32x192xbf16>, vector<2x192xf32> -> vector<2x192xf32>
    %230 = arith.addf %227, %229 : vector<2x192xf32>
    %231 = vector.extract_strided_slice %230 {offsets = [0, 0], sizes = [2, 96], strides = [1, 1]} : vector<2x192xf32> to vector<2x96xf32>
    %232 = vector.extract_strided_slice %230 {offsets = [0, 96], sizes = [2, 96], strides = [1, 1]} : vector<2x192xf32> to vector<2x96xf32>
    %233 = vector.extract_strided_slice %231 {offsets = [0, 0], sizes = [2, 32], strides = [1, 1]} : vector<2x96xf32> to vector<2x32xf32>
    %234 = vector.extract_strided_slice %232 {offsets = [0, 0], sizes = [2, 32], strides = [1, 1]} : vector<2x96xf32> to vector<2x32xf32>
    %235 = arith.addf %233, %234 : vector<2x32xf32>
    %236 = arith.negf %235 : vector<2x32xf32>
    %237 = math.exp %236 : vector<2x32xf32>
    %cst_43 = arith.constant 1.000000e+00 : f32
    %238 = vector.broadcast %cst_43 : f32 to vector<2x32xf32>
    %239 = arith.addf %238, %237 : vector<2x32xf32>
    %240 = arith.divf %238, %239 : vector<2x32xf32>
    %241 = vector.extract_strided_slice %231 {offsets = [0, 32], sizes = [2, 32], strides = [1, 1]} : vector<2x96xf32> to vector<2x32xf32>
    %242 = vector.extract_strided_slice %232 {offsets = [0, 32], sizes = [2, 32], strides = [1, 1]} : vector<2x96xf32> to vector<2x32xf32>
    %243 = arith.addf %241, %242 : vector<2x32xf32>
    %244 = arith.negf %243 : vector<2x32xf32>
    %245 = math.exp %244 : vector<2x32xf32>
    %cst_44 = arith.constant 1.000000e+00 : f32
    %246 = vector.broadcast %cst_44 : f32 to vector<2x32xf32>
    %247 = arith.addf %246, %245 : vector<2x32xf32>
    %248 = arith.divf %246, %247 : vector<2x32xf32>
    %249 = vector.extract_strided_slice %231 {offsets = [0, 64], sizes = [2, 32], strides = [1, 1]} : vector<2x96xf32> to vector<2x32xf32>
    %250 = vector.extract_strided_slice %232 {offsets = [0, 64], sizes = [2, 32], strides = [1, 1]} : vector<2x96xf32> to vector<2x32xf32>
    %251 = arith.mulf %240, %250 : vector<2x32xf32>
    %252 = arith.addf %249, %251 : vector<2x32xf32>
    %253 = math.tanh %252 : vector<2x32xf32>
    %cst_45 = arith.constant 1.000000e+00 : f32
    %254 = vector.broadcast %cst_45 : f32 to vector<2x32xf32>
    %255 = arith.subf %254, %248 : vector<2x32xf32>
    %256 = arith.mulf %255, %253 : vector<2x32xf32>
    %257 = arith.mulf %248, %205 : vector<2x32xf32>
    %258 = arith.addf %256, %257 : vector<2x32xf32>
    %259 = arith.truncf %258 : vector<2x32xf32> to vector<2x32xbf16>
    %cst_46 = arith.constant dense<0.000000e+00> : vector<2x32xf32>
    %260 = tpu.matmul %259, %3, %cst_46 {dimension_numbers = #tpu.dot_dimension_numbers<[1], [0], [0], [1], [0, 0, 1, 1], [], []>} : vector<2x32xbf16>, vector<32x32xbf16>, vector<2x32xf32> -> vector<2x32xf32>
    %261 = arith.addf %260, %6 : vector<2x32xf32>
    %262 = tpu.reduce_index %261 {axis = 1 : i32, kind = #tpu.reduction_kind<arg_max>} : vector<2x32xf32> -> vector<2xi32>
    %263 = vector.shape_cast %262 : vector<2xi32> to vector<2x1xi32>
    %cst_47 = arith.constant dense<0xFF800000> : vector<2xf32>
    %264 = vector.multi_reduction <maximumf>, %261, %cst_47 [1] : vector<2x32xf32> to vector<2xf32>
    %265 = vector.shape_cast %264 : vector<2xf32> to vector<2x1xf32>
    %266 = vector.broadcast %265 : vector<2x1xf32> to vector<2x32xf32>
    %267 = arith.subf %261, %266 : vector<2x32xf32>
    %268 = math.exp %267 : vector<2x32xf32>
    %cst_48 = arith.constant dense<0.000000e+00> : vector<2xf32>
    %269 = vector.multi_reduction <add>, %268, %cst_48 [1] : vector<2x32xf32> to vector<2xf32>
    %270 = vector.shape_cast %269 : vector<2xf32> to vector<2x1xf32>
    %271 = math.log %270 : vector<2x1xf32>
    %272 = arith.addf %271, %265 : vector<2x1xf32>
    %273 = vector.broadcast %272 : vector<2x1xf32> to vector<2x32xf32>
    %274 = arith.subf %261, %273 : vector<2x32xf32>
    %275 = vector.broadcast %263 : vector<2x1xi32> to vector<2x32xi32>
    %276 = arith.cmpi eq, %0, %275 : vector<2x32xi32>
    %277 = arith.extui %276 : vector<2x32xi1> to vector<2x32xi32>
    %278 = arith.sitofp %277 : vector<2x32xi32> to vector<2x32xf32>
    %279 = arith.truncf %278 : vector<2x32xf32> to vector<2x32xbf16>
    %cst_49 = arith.constant dense<0.000000e+00> : vector<2x192xf32>
    %280 = tpu.matmul %279, %1, %cst_49 {dimension_numbers = #tpu.dot_dimension_numbers<[1], [0], [0], [1], [0, 0, 1, 1], [], []>} : vector<2x32xbf16>, vector<32x192xbf16>, vector<2x192xf32> -> vector<2x192xf32>
    %281 = arith.truncf %258 : vector<2x32xf32> to vector<2x32xbf16>
    %cst_50 = arith.constant dense<0.000000e+00> : vector<2x192xf32>
    %282 = tpu.matmul %281, %2, %cst_50 {dimension_numbers = #tpu.dot_dimension_numbers<[1], [0], [0], [1], [0, 0, 1, 1], [], []>} : vector<2x32xbf16>, vector<32x192xbf16>, vector<2x192xf32> -> vector<2x192xf32>
    %283 = arith.addf %280, %282 : vector<2x192xf32>
    %284 = vector.extract_strided_slice %283 {offsets = [0, 0], sizes = [2, 96], strides = [1, 1]} : vector<2x192xf32> to vector<2x96xf32>
    %285 = vector.extract_strided_slice %283 {offsets = [0, 96], sizes = [2, 96], strides = [1, 1]} : vector<2x192xf32> to vector<2x96xf32>
    %286 = vector.extract_strided_slice %284 {offsets = [0, 0], sizes = [2, 32], strides = [1, 1]} : vector<2x96xf32> to vector<2x32xf32>
    %287 = vector.extract_strided_slice %285 {offsets = [0, 0], sizes = [2, 32], strides = [1, 1]} : vector<2x96xf32> to vector<2x32xf32>
    %288 = arith.addf %286, %287 : vector<2x32xf32>
    %289 = arith.negf %288 : vector<2x32xf32>
    %290 = math.exp %289 : vector<2x32xf32>
    %cst_51 = arith.constant 1.000000e+00 : f32
    %291 = vector.broadcast %cst_51 : f32 to vector<2x32xf32>
    %292 = arith.addf %291, %290 : vector<2x32xf32>
    %293 = arith.divf %291, %292 : vector<2x32xf32>
    %294 = vector.extract_strided_slice %284 {offsets = [0, 32], sizes = [2, 32], strides = [1, 1]} : vector<2x96xf32> to vector<2x32xf32>
    %295 = vector.extract_strided_slice %285 {offsets = [0, 32], sizes = [2, 32], strides = [1, 1]} : vector<2x96xf32> to vector<2x32xf32>
    %296 = arith.addf %294, %295 : vector<2x32xf32>
    %297 = arith.negf %296 : vector<2x32xf32>
    %298 = math.exp %297 : vector<2x32xf32>
    %cst_52 = arith.constant 1.000000e+00 : f32
    %299 = vector.broadcast %cst_52 : f32 to vector<2x32xf32>
    %300 = arith.addf %299, %298 : vector<2x32xf32>
    %301 = arith.divf %299, %300 : vector<2x32xf32>
    %302 = vector.extract_strided_slice %284 {offsets = [0, 64], sizes = [2, 32], strides = [1, 1]} : vector<2x96xf32> to vector<2x32xf32>
    %303 = vector.extract_strided_slice %285 {offsets = [0, 64], sizes = [2, 32], strides = [1, 1]} : vector<2x96xf32> to vector<2x32xf32>
    %304 = arith.mulf %293, %303 : vector<2x32xf32>
    %305 = arith.addf %302, %304 : vector<2x32xf32>
    %306 = math.tanh %305 : vector<2x32xf32>
    %cst_53 = arith.constant 1.000000e+00 : f32
    %307 = vector.broadcast %cst_53 : f32 to vector<2x32xf32>
    %308 = arith.subf %307, %301 : vector<2x32xf32>
    %309 = arith.mulf %308, %306 : vector<2x32xf32>
    %310 = arith.mulf %301, %258 : vector<2x32xf32>
    %311 = arith.addf %309, %310 : vector<2x32xf32>
    %312 = arith.truncf %311 : vector<2x32xf32> to vector<2x32xbf16>
    %cst_54 = arith.constant dense<0.000000e+00> : vector<2x32xf32>
    %313 = tpu.matmul %312, %3, %cst_54 {dimension_numbers = #tpu.dot_dimension_numbers<[1], [0], [0], [1], [0, 0, 1, 1], [], []>} : vector<2x32xbf16>, vector<32x32xbf16>, vector<2x32xf32> -> vector<2x32xf32>
    %314 = arith.addf %313, %6 : vector<2x32xf32>
    %315 = tpu.reduce_index %314 {axis = 1 : i32, kind = #tpu.reduction_kind<arg_max>} : vector<2x32xf32> -> vector<2xi32>
    %316 = vector.shape_cast %315 : vector<2xi32> to vector<2x1xi32>
    %cst_55 = arith.constant dense<0xFF800000> : vector<2xf32>
    %317 = vector.multi_reduction <maximumf>, %314, %cst_55 [1] : vector<2x32xf32> to vector<2xf32>
    %318 = vector.shape_cast %317 : vector<2xf32> to vector<2x1xf32>
    %319 = vector.broadcast %318 : vector<2x1xf32> to vector<2x32xf32>
    %320 = arith.subf %314, %319 : vector<2x32xf32>
    %321 = math.exp %320 : vector<2x32xf32>
    %cst_56 = arith.constant dense<0.000000e+00> : vector<2xf32>
    %322 = vector.multi_reduction <add>, %321, %cst_56 [1] : vector<2x32xf32> to vector<2xf32>
    %323 = vector.shape_cast %322 : vector<2xf32> to vector<2x1xf32>
    %324 = math.log %323 : vector<2x1xf32>
    %325 = arith.addf %324, %318 : vector<2x1xf32>
    %326 = vector.broadcast %325 : vector<2x1xf32> to vector<2x32xf32>
    %327 = arith.subf %314, %326 : vector<2x32xf32>
    %328 = vector.broadcast %316 : vector<2x1xi32> to vector<2x32xi32>
    %329 = arith.cmpi eq, %0, %328 : vector<2x32xi32>
    %330 = arith.extui %329 : vector<2x32xi1> to vector<2x32xi32>
    %331 = arith.sitofp %330 : vector<2x32xi32> to vector<2x32xf32>
    %332 = arith.truncf %331 : vector<2x32xf32> to vector<2x32xbf16>
    %cst_57 = arith.constant dense<0.000000e+00> : vector<2x192xf32>
    %333 = tpu.matmul %332, %1, %cst_57 {dimension_numbers = #tpu.dot_dimension_numbers<[1], [0], [0], [1], [0, 0, 1, 1], [], []>} : vector<2x32xbf16>, vector<32x192xbf16>, vector<2x192xf32> -> vector<2x192xf32>
    %334 = arith.truncf %311 : vector<2x32xf32> to vector<2x32xbf16>
    %cst_58 = arith.constant dense<0.000000e+00> : vector<2x192xf32>
    %335 = tpu.matmul %334, %2, %cst_58 {dimension_numbers = #tpu.dot_dimension_numbers<[1], [0], [0], [1], [0, 0, 1, 1], [], []>} : vector<2x32xbf16>, vector<32x192xbf16>, vector<2x192xf32> -> vector<2x192xf32>
    %336 = arith.addf %333, %335 : vector<2x192xf32>
    %337 = vector.extract_strided_slice %336 {offsets = [0, 0], sizes = [2, 96], strides = [1, 1]} : vector<2x192xf32> to vector<2x96xf32>
    %338 = vector.extract_strided_slice %336 {offsets = [0, 96], sizes = [2, 96], strides = [1, 1]} : vector<2x192xf32> to vector<2x96xf32>
    %339 = vector.extract_strided_slice %337 {offsets = [0, 0], sizes = [2, 32], strides = [1, 1]} : vector<2x96xf32> to vector<2x32xf32>
    %340 = vector.extract_strided_slice %338 {offsets = [0, 0], sizes = [2, 32], strides = [1, 1]} : vector<2x96xf32> to vector<2x32xf32>
    %341 = arith.addf %339, %340 : vector<2x32xf32>
    %342 = arith.negf %341 : vector<2x32xf32>
    %343 = math.exp %342 : vector<2x32xf32>
    %cst_59 = arith.constant 1.000000e+00 : f32
    %344 = vector.broadcast %cst_59 : f32 to vector<2x32xf32>
    %345 = arith.addf %344, %343 : vector<2x32xf32>
    %346 = arith.divf %344, %345 : vector<2x32xf32>
    %347 = vector.extract_strided_slice %337 {offsets = [0, 32], sizes = [2, 32], strides = [1, 1]} : vector<2x96xf32> to vector<2x32xf32>
    %348 = vector.extract_strided_slice %338 {offsets = [0, 32], sizes = [2, 32], strides = [1, 1]} : vector<2x96xf32> to vector<2x32xf32>
    %349 = arith.addf %347, %348 : vector<2x32xf32>
    %350 = arith.negf %349 : vector<2x32xf32>
    %351 = math.exp %350 : vector<2x32xf32>
    %cst_60 = arith.constant 1.000000e+00 : f32
    %352 = vector.broadcast %cst_60 : f32 to vector<2x32xf32>
    %353 = arith.addf %352, %351 : vector<2x32xf32>
    %354 = arith.divf %352, %353 : vector<2x32xf32>
    %355 = vector.extract_strided_slice %337 {offsets = [0, 64], sizes = [2, 32], strides = [1, 1]} : vector<2x96xf32> to vector<2x32xf32>
    %356 = vector.extract_strided_slice %338 {offsets = [0, 64], sizes = [2, 32], strides = [1, 1]} : vector<2x96xf32> to vector<2x32xf32>
    %357 = arith.mulf %346, %356 : vector<2x32xf32>
    %358 = arith.addf %355, %357 : vector<2x32xf32>
    %359 = math.tanh %358 : vector<2x32xf32>
    %cst_61 = arith.constant 1.000000e+00 : f32
    %360 = vector.broadcast %cst_61 : f32 to vector<2x32xf32>
    %361 = arith.subf %360, %354 : vector<2x32xf32>
    %362 = arith.mulf %361, %359 : vector<2x32xf32>
    %363 = arith.mulf %354, %311 : vector<2x32xf32>
    %364 = arith.addf %362, %363 : vector<2x32xf32>
    %365 = arith.truncf %364 : vector<2x32xf32> to vector<2x32xbf16>
    %cst_62 = arith.constant dense<0.000000e+00> : vector<2x32xf32>
    %366 = tpu.matmul %365, %3, %cst_62 {dimension_numbers = #tpu.dot_dimension_numbers<[1], [0], [0], [1], [0, 0, 1, 1], [], []>} : vector<2x32xbf16>, vector<32x32xbf16>, vector<2x32xf32> -> vector<2x32xf32>
    %367 = arith.addf %366, %6 : vector<2x32xf32>
    %368 = tpu.reduce_index %367 {axis = 1 : i32, kind = #tpu.reduction_kind<arg_max>} : vector<2x32xf32> -> vector<2xi32>
    %369 = vector.shape_cast %368 : vector<2xi32> to vector<2x1xi32>
    %cst_63 = arith.constant dense<0xFF800000> : vector<2xf32>
    %370 = vector.multi_reduction <maximumf>, %367, %cst_63 [1] : vector<2x32xf32> to vector<2xf32>
    %371 = vector.shape_cast %370 : vector<2xf32> to vector<2x1xf32>
    %372 = vector.broadcast %371 : vector<2x1xf32> to vector<2x32xf32>
    %373 = arith.subf %367, %372 : vector<2x32xf32>
    %374 = math.exp %373 : vector<2x32xf32>
    %cst_64 = arith.constant dense<0.000000e+00> : vector<2xf32>
    %375 = vector.multi_reduction <add>, %374, %cst_64 [1] : vector<2x32xf32> to vector<2xf32>
    %376 = vector.shape_cast %375 : vector<2xf32> to vector<2x1xf32>
    %377 = math.log %376 : vector<2x1xf32>
    %378 = arith.addf %377, %371 : vector<2x1xf32>
    %379 = vector.broadcast %378 : vector<2x1xf32> to vector<2x32xf32>
    %380 = arith.subf %367, %379 : vector<2x32xf32>
    %381 = vector.broadcast %369 : vector<2x1xi32> to vector<2x32xi32>
    %382 = arith.cmpi eq, %0, %381 : vector<2x32xi32>
    %383 = arith.extui %382 : vector<2x32xi1> to vector<2x32xi32>
    %384 = arith.sitofp %383 : vector<2x32xi32> to vector<2x32xf32>
    %385 = arith.truncf %384 : vector<2x32xf32> to vector<2x32xbf16>
    %cst_65 = arith.constant dense<0.000000e+00> : vector<2x192xf32>
    %386 = tpu.matmul %385, %1, %cst_65 {dimension_numbers = #tpu.dot_dimension_numbers<[1], [0], [0], [1], [0, 0, 1, 1], [], []>} : vector<2x32xbf16>, vector<32x192xbf16>, vector<2x192xf32> -> vector<2x192xf32>
    %387 = arith.truncf %364 : vector<2x32xf32> to vector<2x32xbf16>
    %cst_66 = arith.constant dense<0.000000e+00> : vector<2x192xf32>
    %388 = tpu.matmul %387, %2, %cst_66 {dimension_numbers = #tpu.dot_dimension_numbers<[1], [0], [0], [1], [0, 0, 1, 1], [], []>} : vector<2x32xbf16>, vector<32x192xbf16>, vector<2x192xf32> -> vector<2x192xf32>
    %389 = arith.addf %386, %388 : vector<2x192xf32>
    %390 = vector.extract_strided_slice %389 {offsets = [0, 0], sizes = [2, 96], strides = [1, 1]} : vector<2x192xf32> to vector<2x96xf32>
    %391 = vector.extract_strided_slice %389 {offsets = [0, 96], sizes = [2, 96], strides = [1, 1]} : vector<2x192xf32> to vector<2x96xf32>
    %392 = vector.extract_strided_slice %390 {offsets = [0, 0], sizes = [2, 32], strides = [1, 1]} : vector<2x96xf32> to vector<2x32xf32>
    %393 = vector.extract_strided_slice %391 {offsets = [0, 0], sizes = [2, 32], strides = [1, 1]} : vector<2x96xf32> to vector<2x32xf32>
    %394 = arith.addf %392, %393 : vector<2x32xf32>
    %395 = arith.negf %394 : vector<2x32xf32>
    %396 = math.exp %395 : vector<2x32xf32>
    %cst_67 = arith.constant 1.000000e+00 : f32
    %397 = vector.broadcast %cst_67 : f32 to vector<2x32xf32>
    %398 = arith.addf %397, %396 : vector<2x32xf32>
    %399 = arith.divf %397, %398 : vector<2x32xf32>
    %400 = vector.extract_strided_slice %390 {offsets = [0, 32], sizes = [2, 32], strides = [1, 1]} : vector<2x96xf32> to vector<2x32xf32>
    %401 = vector.extract_strided_slice %391 {offsets = [0, 32], sizes = [2, 32], strides = [1, 1]} : vector<2x96xf32> to vector<2x32xf32>
    %402 = arith.addf %400, %401 : vector<2x32xf32>
    %403 = arith.negf %402 : vector<2x32xf32>
    %404 = math.exp %403 : vector<2x32xf32>
    %cst_68 = arith.constant 1.000000e+00 : f32
    %405 = vector.broadcast %cst_68 : f32 to vector<2x32xf32>
    %406 = arith.addf %405, %404 : vector<2x32xf32>
    %407 = arith.divf %405, %406 : vector<2x32xf32>
    %408 = vector.extract_strided_slice %390 {offsets = [0, 64], sizes = [2, 32], strides = [1, 1]} : vector<2x96xf32> to vector<2x32xf32>
    %409 = vector.extract_strided_slice %391 {offsets = [0, 64], sizes = [2, 32], strides = [1, 1]} : vector<2x96xf32> to vector<2x32xf32>
    %410 = arith.mulf %399, %409 : vector<2x32xf32>
    %411 = arith.addf %408, %410 : vector<2x32xf32>
    %412 = math.tanh %411 : vector<2x32xf32>
    %cst_69 = arith.constant 1.000000e+00 : f32
    %413 = vector.broadcast %cst_69 : f32 to vector<2x32xf32>
    %414 = arith.subf %413, %407 : vector<2x32xf32>
    %415 = arith.mulf %414, %412 : vector<2x32xf32>
    %416 = arith.mulf %407, %364 : vector<2x32xf32>
    %417 = arith.addf %415, %416 : vector<2x32xf32>
    %418 = arith.truncf %417 : vector<2x32xf32> to vector<2x32xbf16>
    %cst_70 = arith.constant dense<0.000000e+00> : vector<2x32xf32>
    %419 = tpu.matmul %418, %3, %cst_70 {dimension_numbers = #tpu.dot_dimension_numbers<[1], [0], [0], [1], [0, 0, 1, 1], [], []>} : vector<2x32xbf16>, vector<32x32xbf16>, vector<2x32xf32> -> vector<2x32xf32>
    %420 = arith.addf %419, %6 : vector<2x32xf32>
    %cst_71 = arith.constant dense<0xFF800000> : vector<2xf32>
    %421 = vector.multi_reduction <maximumf>, %420, %cst_71 [1] : vector<2x32xf32> to vector<2xf32>
    %422 = vector.shape_cast %421 : vector<2xf32> to vector<2x1xf32>
    %423 = vector.broadcast %422 : vector<2x1xf32> to vector<2x32xf32>
    %424 = arith.subf %420, %423 : vector<2x32xf32>
    %425 = math.exp %424 : vector<2x32xf32>
    %cst_72 = arith.constant dense<0.000000e+00> : vector<2xf32>
    %426 = vector.multi_reduction <add>, %425, %cst_72 [1] : vector<2x32xf32> to vector<2xf32>
    %427 = vector.shape_cast %426 : vector<2xf32> to vector<2x1xf32>
    %428 = math.log %427 : vector<2x1xf32>
    %429 = arith.addf %428, %422 : vector<2x1xf32>
    %430 = vector.broadcast %429 : vector<2x1xf32> to vector<2x32xf32>
    %431 = arith.subf %420, %430 : vector<2x32xf32>
    %432 = tpu.concatenate %62, %115, %168, %221, %274, %327, %380, %431 in 1 : vector<2x32xf32>, vector<2x32xf32>, vector<2x32xf32>, vector<2x32xf32>, vector<2x32xf32>, vector<2x32xf32>, vector<2x32xf32>, vector<2x32xf32> -> vector<2x256xf32>
    %c0_73 = arith.constant 0 : index
    %c0_74 = arith.constant 0 : index
    %433 = vector.load %arg5[%c0_73, %c0_74] : memref<2x256xf32, #tpu.memory_space<vmem>>, vector<2x256xf32>
    tpu.vector_store %arg5[%c0_73, %c0_74], %432 {strides = array<i32>} : memref<2x256xf32, #tpu.memory_space<vmem>>, vector<2x256xf32>,
    %c0_75 = arith.constant 0 : index
    %c0_76 = arith.constant 0 : index
    %c0_77 = arith.constant 0 : index
    %434 = vector.load %arg6[%c0_75, %c0_76, %c0_77] : memref<1x2x32xf32, #tpu.memory_space<vmem>>, vector<1x2x32xf32>
    %435 = vector.shape_cast %434 : vector<1x2x32xf32> to vector<2x32xf32>
    %436 = vector.shape_cast %417 : vector<2x32xf32> to vector<1x2x32xf32>
    tpu.vector_store %arg6[%c0_75, %c0_76, %c0_77], %436 {strides = array<i32>} : memref<1x2x32xf32, #tpu.memory_space<vmem>>, vector<1x2x32xf32>,
    return
  }
}

</mosaic_0001>

<llo_original>
// kernel: tpu_custom_call.1
$region0: #{tpu_custom_call.1}
  #allocation0 [shape = 'u32[]', space=smem, size = 0x4, offset = 0x4, fixed_abs, tag = 'smem constant byte address 0x4 - core index']
  #allocation1 [shape = 'u32[144,128]{1,0:T(1,128)}', space=vmem, size = 0x12000, scoped, tag = 'internal scratch']
  %s0 = inlined_call_operand.hbm [shape: bf16[32,192], index: 0, kind: input, shape index: {}]
  %s1 = inlined_call_operand.hbm [shape: bf16[32,192], index: 1, kind: input, shape index: {}]
  %s2 = inlined_call_operand.hbm [shape: bf16[32,32], index: 2, kind: input, shape index: {}]
  %s3 = inlined_call_operand.vmem [shape: f32[1,32], index: 3, kind: input, shape index: {}]
  %s4 = inlined_call_operand.vmem [shape: f32[1,2,32], index: 4, kind: input, shape index: {}]
  %s5 = inlined_call_operand.hbm [shape: f32[2,256], index: 5, kind: output, shape index: {0}]
  %s6 = inlined_call_operand.hbm [shape: f32[1,2,32], index: 6, kind: output, shape index: {1}]
  %7 = xla_tuple %s5, %s6
  %s8 = sld [smem:[#allocation0]]
  $region50: #{tpu_custom_call.1} parent=0
    _
  %s10 = ssub.s32 1, %s8
  %s11 = scalar_select 0, %s10, %s8
  $region1: #{tpu_custom_call.1} parent=0
    #allocation2 [shape = 'u8[16384]{0}', space=vmem, size = 0x4000, scoped, tag = 'input window, operand 0, single buffered']
    #allocation3 [shape = 's32[1]{0}', space=sflag, size = 0x4, scoped, tag = 'scoped memory for tpu_custom_call.1']
    #allocation4 [shape = 's32[1]{0}', space=sflag, size = 0x4, scoped, tag = 'scoped memory for tpu_custom_call.1']
    #allocation5 [shape = 'u8[16384]{0}', space=vmem, size = 0x4000, scoped, tag = 'input window, operand 1, single buffered']
    #allocation6 [shape = 's32[1]{0}', space=sflag, size = 0x4, scoped, tag = 'scoped memory for tpu_custom_call.1']
    #allocation7 [shape = 'u8[8192]{0}', space=vmem, size = 0x2000, scoped, tag = 'input window, operand 2, single buffered']
    #allocation8 [shape = 'u8[2048]{0}', space=vmem, size = 0x800, scoped, tag = 'output window, operand 0, single buffered']
    #allocation9 [shape = 'u8[1024]{0}', space=vmem, size = 0x400, scoped, tag = 'output window, operand 1, single buffered']
    #allocation10 [shape = 's32[1]{0}', space=sflag, size = 0x4, scoped, tag = 'scoped memory for tpu_custom_call.1']
    %12 = vsyncpa [#allocation3], 0
    %13 = vsyncpa [#allocation6], 0
    %14 = vsyncpa [#allocation4], 0
    %15 = vsyncpa [#allocation10], 0
    // Predicated region
    $region2: #{tpu_custom_call.1} parent=1 // pred_check
      _
    $region3: #{tpu_custom_call.1} parent=1 // pred_check_branch
      %17 = sbr.rel (0) target = $region5
    $region4: #{tpu_custom_call.1} parent=1 // pred_region
      %s19 = ssub.s32 512, 512
      %20 = vsyncadd [#allocation3], %s19
      %s21 = sshll.u32 [#allocation2], 4
      %s22 = int_to_ptr.vmem [resolvable:$true] %s21
      %27 = dma.hbm_to_vmem [thread:$0]  %s0, 512, %s22, [#allocation3], 128, 128, 8
    $region5: #{tpu_custom_call.1} parent=1 // pred_fallthru
      _
    // Predicated region
    $region6: #{tpu_custom_call.1} parent=1 // pred_check
      _
    $region7: #{tpu_custom_call.1} parent=1 // pred_check_branch
      %29 = sbr.rel (0) target = $region9
    $region8: #{tpu_custom_call.1} parent=1 // pred_region
      %s31 = ssub.s32 512, 512
      %32 = vsyncadd [#allocation6], %s31
      %s33 = sshll.u32 [#allocation5], 4
      %s34 = int_to_ptr.vmem [resolvable:$true] %s33
      %39 = dma.hbm_to_vmem [thread:$0]  %s1, 512, %s34, [#allocation6], 128, 128, 8
    $region9: #{tpu_custom_call.1} parent=1 // pred_fallthru
      _
    // Predicated region
    $region10: #{tpu_custom_call.1} parent=1 // pred_check
      _
    $region11: #{tpu_custom_call.1} parent=1 // pred_check_branch
      %41 = sbr.rel (0) target = $region13
    $region12: #{tpu_custom_call.1} parent=1 // pred_region
      %s43 = ssub.s32 256, 256
      %44 = vsyncadd [#allocation6], %s43
      %s45 = sshll.u32 [#allocation7], 4
      %s46 = int_to_ptr.vmem [resolvable:$true] %s45
      %51 = dma.hbm_to_vmem [thread:$0]  %s2, 256, %s46, [#allocation6], 64, 64, 4
    $region13: #{tpu_custom_call.1} parent=1 // pred_fallthru
      _
    // Predicated region
    $region14: #{tpu_custom_call.1} parent=1 // pred_check
      _
    $region15: #{tpu_custom_call.1} parent=1 // pred_check_branch
      %53 = sbr.rel (0) target = $region17
    $region16: #{tpu_custom_call.1} parent=1 // pred_region
      _
    $region17: #{tpu_custom_call.1} parent=1 // pred_fallthru
      _
    // Predicated region
    $region18: #{tpu_custom_call.1} parent=1 // pred_check
      _
    $region19: #{tpu_custom_call.1} parent=1 // pred_check_branch
      %55 = sbr.rel (0) target = $region21
    $region20: #{tpu_custom_call.1} parent=1 // pred_region
      _
    $region21: #{tpu_custom_call.1} parent=1 // pred_fallthru
      _
    // Predicated region
    $region22: #{tpu_custom_call.1} parent=1 // pred_check
      _
    $region23: #{tpu_custom_call.1} parent=1 // pred_check_branch
      %57 = sbr.rel (0) target = $region25
    $region24: #{tpu_custom_call.1} parent=1 // pred_region
      %58 = dma.done [#allocation3], 512
    $region25: #{tpu_custom_call.1} parent=1 // pred_fallthru
      _
    // Predicated region
    $region26: #{tpu_custom_call.1} parent=1 // pred_check
      _
    $region27: #{tpu_custom_call.1} parent=1 // pred_check_branch
      %60 = sbr.rel (0) target = $region29
    $region28: #{tpu_custom_call.1} parent=1 // pred_region
      %61 = dma.done [#allocation6], 512
    $region29: #{tpu_custom_call.1} parent=1 // pred_fallthru
      _
    // Predicated region
    $region30: #{tpu_custom_call.1} parent=1 // pred_check
      _
    $region31: #{tpu_custom_call.1} parent=1 // pred_check_branch
      %63 = sbr.rel (0) target = $region33
    $region32: #{tpu_custom_call.1} parent=1 // pred_region
      %64 = dma.done [#allocation6], 256
    $region33: #{tpu_custom_call.1} parent=1 // pred_fallthru
      _
    %v66 = vlaneseq
    %v67 = vand.u32 %v66, 127
    %v68 = vld [vmem:[#allocation2] sm:$0xff]
    %v69 = vld [vmem:[#allocation2 + $0x8] sm:$0xff]
    %v70 = vld [vmem:[#allocation2 + $0x10] sm:$0xff]
    %v71 = vld [vmem:[#allocation2 + $0x18] sm:$0xff]
    %v72 = vld [vmem:[#allocation5] sm:$0xff]
    %v73 = vld [vmem:[#allocation5 + $0x8] sm:$0xff]
    %v74 = vld [vmem:[#allocation5 + $0x10] sm:$0xff]
    %v75 = vld [vmem:[#allocation5 + $0x18] sm:$0xff]
    %v76 = vld [vmem:[#allocation7] sm:$0xf]
    %v77 = vld [vmem:[#allocation7 + $0x4] sm:$0xf]
    %v78 = vld [vmem:[#allocation7 + $0x8] sm:$0xf]
    %v79 = vld [vmem:[#allocation7 + $0xc] sm:$0xf]
    %v80 = vld [vmem:[%s3] sm:$0x1]
    %v82 = vlaneseq
    %v83 = vshrl.u32 %v82, 7
    %v84 = vsub.s32 0, %v83
    %v85 = vrot.slane %v80, %v84
    %v87 = vld [vmem:[%s4] sm:$0x3]
    %vm88 = vcmp.eq.s32.totalorder %v67, 1
    %v89 = vsel %vm88, 1, 0
    %v90 = vcvt.s32.f32 %v89
    %v91 = vpack.c.bf16 %v90, %v90
    %v92 = vpack.c.bf16 %v87, %v87
    %v97 = vunpack.c.l.b16 %v72
    %v98 = vunpack.c.h.b16 %v72
    %v99 = vunpack.c.l.b16 %v73
    %v100 = vunpack.c.h.b16 %v73
    %v101 = vunpack.c.l.b16 %v74
    %v102 = vunpack.c.h.b16 %v74
    %v103 = vunpack.c.l.b16 %v75
    %v104 = vunpack.c.h.b16 %v75
    %v105 = vpack.c.b16 %v99, %v97
    %v106 = vpack.c.b16 %v100, %v98
    %v107 = vpack.c.b16 %v103, %v101
    %v108 = vpack.c.b16 %v104, %v102
    %vm113 = vcmask 261120
    %v115 = vsel %vm113, %v92, 0
    %117 = vmatprep.subr.bf16.mxu0 %v106
    %118 = vmatpush1.bf16.msra.mxu0 %v105
    %119 = vmatprep.subr.bf16.mxu0 %v108
    %120 = vmatpush1.bf16.msra.mxu0 %v107
    %121 = vmatprep.subr.bf16.mxu0 0
    %122 = vmatpush1.bf16.msra.mxu0 0
    %123 = vmatprep.subr.bf16.mxu0 0
    %124 = vmatpush1.bf16.msra.mxu0 0
    %125 = vmatprep.subr.bf16.mxu0 0
    %126 = vmatpush1.bf16.msra.mxu0 0
    %127 = vmatprep.subr.bf16.mxu0 0
    %128 = vmatpush1.bf16.msra.mxu0 0
    %129 = vmatprep.subr.bf16.mxu0 0
    %130 = vmatpush1.bf16.msra.mxu0 0
    %131 = vmatprep.subr.bf16.mxu0 0
    %132 = vmatpush1.bf16.msra.mxu0 0
    %133 = vmatprep.subr.bf16.mxu0 0
    %134 = vmatpush1.bf16.msra.mxu0 0
    %135 = vmatprep.subr.bf16.mxu0 0
    %136 = vmatpush1.bf16.msra.mxu0 0
    %137 = vmatprep.subr.bf16.mxu0 0
    %138 = vmatpush1.bf16.msra.mxu0 0
    %139 = vmatprep.subr.bf16.mxu0 0
    %140 = vmatpush1.bf16.msra.mxu0 0
    %141 = vmatprep.subr.bf16.mxu0 0
    %142 = vmatpush1.bf16.msra.mxu0 0
    %143 = vmatprep.subr.bf16.mxu0 0
    %144 = vmatpush1.bf16.msra.mxu0 0
    %145 = vmatprep.subr.bf16.mxu0 0
    %146 = vmatpush1.bf16.msra.mxu0 0
    %147 = vmatprep.subr.bf16.mxu0 0
    %148 = vmatpush1.bf16.msra.mxu0 0
    %149 = vmatprep.mubr.bf16.mxu0 0
    %150 = vmatmul.mubr.bf16.gmra.mrb[0].mxu0 %v115
    %v151 = vpop.f32.mrb[0].mxu0
    %v152 = vadd.f32 0.0, %v151
    %v153 = vpop.f32.mrb[0].mxu0
    %v154 = vadd.f32 0.0, %v153
    %v155 = vpop.f32.mrb[0].mxu0
    %v156 = vpop.f32.mrb[0].mxu0
    %157 = vdwg.mxu0
    %v162 = vunpack.c.l.b16 %v68
    %v163 = vunpack.c.h.b16 %v68
    %v164 = vunpack.c.l.b16 %v69
    %v165 = vunpack.c.h.b16 %v69
    %v166 = vunpack.c.l.b16 %v70
    %v167 = vunpack.c.h.b16 %v70
    %v168 = vunpack.c.l.b16 %v71
    %v169 = vunpack.c.h.b16 %v71
    %v170 = vpack.c.b16 %v164, %v162
    %v171 = vpack.c.b16 %v165, %v163
    %v172 = vpack.c.b16 %v168, %v166
    %v173 = vpack.c.b16 %v169, %v167
    %v179 = vsel %vm113, %v91, 0
    %181 = vmatprep.subr.bf16.mxu0 %v171
    %182 = vmatpush1.bf16.msra.mxu0 %v170
    %183 = vmatprep.subr.bf16.mxu0 %v173
    %184 = vmatpush1.bf16.msra.mxu0 %v172
    %185 = vmatprep.subr.bf16.mxu0 0
    %186 = vmatpush1.bf16.msra.mxu0 0
    %187 = vmatprep.subr.bf16.mxu0 0
    %188 = vmatpush1.bf16.msra.mxu0 0
    %189 = vmatprep.subr.bf16.mxu0 0
    %190 = vmatpush1.bf16.msra.mxu0 0
    %191 = vmatprep.subr.bf16.mxu0 0
    %192 = vmatpush1.bf16.msra.mxu0 0
    %193 = vmatprep.subr.bf16.mxu0 0
    %194 = vmatpush1.bf16.msra.mxu0 0
    %195 = vmatprep.subr.bf16.mxu0 0
    %196 = vmatpush1.bf16.msra.mxu0 0
    %197 = vmatprep.subr.bf16.mxu0 0
    %198 = vmatpush1.bf16.msra.mxu0 0
    %199 = vmatprep.subr.bf16.mxu0 0
    %200 = vmatpush1.bf16.msra.mxu0 0
    %201 = vmatprep.subr.bf16.mxu0 0
    %202 = vmatpush1.bf16.msra.mxu0 0
    %203 = vmatprep.subr.bf16.mxu0 0
    %204 = vmatpush1.bf16.msra.mxu0 0
    %205 = vmatprep.subr.bf16.mxu0 0
    %206 = vmatpush1.bf16.msra.mxu0 0
    %207 = vmatprep.subr.bf16.mxu0 0
    %208 = vmatpush1.bf16.msra.mxu0 0
    %209 = vmatprep.subr.bf16.mxu0 0
    %210 = vmatpush1.bf16.msra.mxu0 0
    %211 = vmatprep.subr.bf16.mxu0 0
    %212 = vmatpush1.bf16.msra.mxu0 0
    %213 = vmatprep.mubr.bf16.mxu0 0
    %214 = vmatmul.mubr.bf16.gmra.mrb[0].mxu0 %v179
    %v215 = vpop.f32.mrb[0].mxu0
    %v216 = vadd.f32 %v152, %v215
    %v217 = vpop.f32.mrb[0].mxu0
    %v218 = vadd.f32 %v154, %v217
    %v219 = vpop.f32.mrb[0].mxu0
    %v220 = vpop.f32.mrb[0].mxu0
    %221 = vdwg.mxu0
    %223 = vrot.lane.b32.xlu0 %v216, 32
    %v224 = vpop.permute.xlu0 %223
    %v226 = vadd.f32 %v216, %v224
    %v227 = vxor.u32 %v226, 2147483648
    %v228 = vmul.f32 %v227, 1.442695
    %v229 = vpow.pop %v228
    %v230 = vadd.f32 %v229, 1.0
    %v231 = vrcp.pop %v230
    %v232 = vmul.f32 1.0, %v231
    %234 = vrot.lane.b32.xlu0 %v218, 32
    %v235 = vpop.permute.xlu0 %234
    %v237 = vadd.f32 %v216, %v235
    %v238 = vxor.u32 %v237, 2147483648
    %v239 = vmul.f32 %v238, 1.442695
    %v240 = vpow.pop %v239
    %v241 = vadd.f32 %v240, 1.0
    %v242 = vrcp.pop %v241
    %v243 = vmul.f32 1.0, %v242
    %244 = vrot.lane.b32.xlu0 %v218, 96
    %v245 = vpop.permute.xlu0 %244
    %v247 = vmul.f32 %v232, %v245
    %249 = vrot.lane.b32.xlu0 %v247, 64
    %v250 = vpop.permute.xlu0 %249
    %v252 = vadd.f32 %v216, %v250
    %v253 = vtanh.pop %v252
    %v254 = vsub.f32 1.0, %v243
    %256 = vrot.lane.b32.xlu0 %v253, 96
    %v257 = vpop.permute.xlu0 %256
    %v259 = vmul.f32 %v254, %v257
    %261 = vrot.lane.b32.xlu0 %v87, 32
    %v262 = vpop.permute.xlu0 %261
    %v264 = vmul.f32 %v243, %v262
    %v265 = vadd.f32 %v259, %v264
    %v266 = vpack.c.bf16 %v265, %v265
    %268 = vrot.lane.b32.xlu0 %v266, 96
    %v269 = vpop.permute.xlu0 %268
    %v274 = vunpack.c.l.b16 %v76
    %v275 = vunpack.c.l.b16 %v77
    %v276 = vunpack.c.l.b16 %v78
    %v277 = vunpack.c.l.b16 %v79
    %v278 = vpack.c.b16 %v275, %v274
    %v279 = vpack.c.b16 %v277, %v276
    %v283 = vsel %vm113, %v269, 0
    %285 = vmatprep.subr.bf16.mxu0 0
    %286 = vmatpush1.bf16.msra.mxu0 %v278
    %287 = vmatprep.subr.bf16.mxu0 0
    %288 = vmatpush1.bf16.msra.mxu0 %v279
    %289 = vmatprep.subr.bf16.mxu0 0
    %290 = vmatpush1.bf16.msra.mxu0 0
    %291 = vmatprep.subr.bf16.mxu0 0
    %292 = vmatpush1.bf16.msra.mxu0 0
    %293 = vmatprep.subr.bf16.mxu0 0
    %294 = vmatpush1.bf16.msra.mxu0 0
    %295 = vmatprep.subr.bf16.mxu0 0
    %296 = vmatpush1.bf16.msra.mxu0 0
    %297 = vmatprep.subr.bf16.mxu0 0
    %298 = vmatpush1.bf16.msra.mxu0 0
    %299 = vmatprep.subr.bf16.mxu0 0
    %300 = vmatpush1.bf16.msra.mxu0 0
    %301 = vmatprep.subr.bf16.mxu0 0
    %302 = vmatpush1.bf16.msra.mxu0 0
    %303 = vmatprep.subr.bf16.mxu0 0
    %304 = vmatpush1.bf16.msra.mxu0 0
    %305 = vmatprep.subr.bf16.mxu0 0
    %306 = vmatpush1.bf16.msra.mxu0 0
    %307 = vmatprep.subr.bf16.mxu0 0
    %308 = vmatpush1.bf16.msra.mxu0 0
    %309 = vmatprep.subr.bf16.mxu0 0
    %310 = vmatpush1.bf16.msra.mxu0 0
    %311 = vmatprep.subr.bf16.mxu0 0
    %312 = vmatpush1.bf16.msra.mxu0 0
    %313 = vmatprep.subr.bf16.mxu0 0
    %314 = vmatpush1.bf16.msra.mxu0 0
    %315 = vmatprep.subr.bf16.mxu0 0
    %316 = vmatpush1.bf16.msra.mxu0 0
    %317 = vmatprep.mubr.bf16.mxu0 0
    %318 = vmatmul.mubr.bf16.gmra.mrb[0].mxu0 %v283
    %v319 = vpop.f32.mrb[0].mxu0
    %v320 = vadd.f32 %v85, %v319
    %v321 = vpop.f32.mrb[0].mxu0
    %v322 = vpop.f32.mrb[0].mxu0
    %v323 = vpop.f32.mrb[0].mxu0
    %324 = vdwg.mxu0
    %vm325 = vcmask 254976
    %v326 = vsel %vm325, %v320, -inf
    %327 = vmax.index.xlane.f32.xlu0 %v326
    %v328 = vpop.xlane.xlu0 %327
    %329 = vmax.xlane.f32.xlu0 %v326
    %v330 = vpop.xlane.xlu0 %329
    %v331 = vsub.f32 %v320, %v330
    %v332 = vmul.f32 %v331, 1.442695
    %v333 = vpow.pop %v332
    %v334 = vsel %vm325, %v333, 0.0
    %335 = vadd.xlane.f32.xlu0 %v334
    %v336 = vpop.xlane.xlu0 %335
    %v337 = vlog2.pop %v336
    %v338 = vmul.f32 %v337, 0.6931472
    %v339 = vadd.f32 %v338, %v330
    %v340 = vsub.f32 %v320, %v339
    %vm341 = vcmp.eq.s32.totalorder %v67, %v328
    %v342 = vsel %vm341, 1, 0
    %v343 = vcvt.s32.f32 %v342
    %v344 = vpack.c.bf16 %v343, %v343
    %345 = vmatprep.subr.bf16.mxu0 %v106
    %346 = vmatpush1.bf16.msra.mxu0 %v105
    %347 = vmatprep.subr.bf16.mxu0 %v108
    %348 = vmatpush1.bf16.msra.mxu0 %v107
    %349 = vmatprep.subr.bf16.mxu0 0
    %350 = vmatpush1.bf16.msra.mxu0 0
    %351 = vmatprep.subr.bf16.mxu0 0
    %352 = vmatpush1.bf16.msra.mxu0 0
    %353 = vmatprep.subr.bf16.mxu0 0
    %354 = vmatpush1.bf16.msra.mxu0 0
    %355 = vmatprep.subr.bf16.mxu0 0
    %356 = vmatpush1.bf16.msra.mxu0 0
    %357 = vmatprep.subr.bf16.mxu0 0
    %358 = vmatpush1.bf16.msra.mxu0 0
    %359 = vmatprep.subr.bf16.mxu0 0
    %360 = vmatpush1.bf16.msra.mxu0 0
    %361 = vmatprep.subr.bf16.mxu0 0
    %362 = vmatpush1.bf16.msra.mxu0 0
    %363 = vmatprep.subr.bf16.mxu0 0
    %364 = vmatpush1.bf16.msra.mxu0 0
    %365 = vmatprep.subr.bf16.mxu0 0
    %366 = vmatpush1.bf16.msra.mxu0 0
    %367 = vmatprep.subr.bf16.mxu0 0
    %368 = vmatpush1.bf16.msra.mxu0 0
    %369 = vmatprep.subr.bf16.mxu0 0
    %370 = vmatpush1.bf16.msra.mxu0 0
    %371 = vmatprep.subr.bf16.mxu0 0
    %372 = vmatpush1.bf16.msra.mxu0 0
    %373 = vmatprep.subr.bf16.mxu0 0
    %374 = vmatpush1.bf16.msra.mxu0 0
    %375 = vmatprep.subr.bf16.mxu0 0
    %376 = vmatpush1.bf16.msra.mxu0 0
    %377 = vmatprep.mubr.bf16.mxu0 0
    %378 = vmatmul.mubr.bf16.gmra.mrb[0].mxu0 %v283
    %v379 = vpop.f32.mrb[0].mxu0
    %v380 = vadd.f32 0.0, %v379
    %v381 = vpop.f32.mrb[0].mxu0
    %v382 = vadd.f32 0.0, %v381
    %v383 = vpop.f32.mrb[0].mxu0
    %v384 = vpop.f32.mrb[0].mxu0
    %385 = vdwg.mxu0
    %v387 = vsel %vm113, %v344, 0
    %389 = vmatprep.subr.bf16.mxu0 %v171
    %390 = vmatpush1.bf16.msra.mxu0 %v170
    %391 = vmatprep.subr.bf16.mxu0 %v173
    %392 = vmatpush1.bf16.msra.mxu0 %v172
    %393 = vmatprep.subr.bf16.mxu0 0
    %394 = vmatpush1.bf16.msra.mxu0 0
    %395 = vmatprep.subr.bf16.mxu0 0
    %396 = vmatpush1.bf16.msra.mxu0 0
    %397 = vmatprep.subr.bf16.mxu0 0
    %398 = vmatpush1.bf16.msra.mxu0 0
    %399 = vmatprep.subr.bf16.mxu0 0
    %400 = vmatpush1.bf16.msra.mxu0 0
    %401 = vmatprep.subr.bf16.mxu0 0
    %402 = vmatpush1.bf16.msra.mxu0 0
    %403 = vmatprep.subr.bf16.mxu0 0
    %404 = vmatpush1.bf16.msra.mxu0 0
    %405 = vmatprep.subr.bf16.mxu0 0
    %406 = vmatpush1.bf16.msra.mxu0 0
    %407 = vmatprep.subr.bf16.mxu0 0
    %408 = vmatpush1.bf16.msra.mxu0 0
    %409 = vmatprep.subr.bf16.mxu0 0
    %410 = vmatpush1.bf16.msra.mxu0 0
    %411 = vmatprep.subr.bf16.mxu0 0
    %412 = vmatpush1.bf16.msra.mxu0 0
    %413 = vmatprep.subr.bf16.mxu0 0
    %414 = vmatpush1.bf16.msra.mxu0 0
    %415 = vmatprep.subr.bf16.mxu0 0
    %416 = vmatpush1.bf16.msra.mxu0 0
    %417 = vmatprep.subr.bf16.mxu0 0
    %418 = vmatpush1.bf16.msra.mxu0 0
    %419 = vmatprep.subr.bf16.mxu0 0
    %420 = vmatpush1.bf16.msra.mxu0 0
    %421 = vmatprep.mubr.bf16.mxu0 0
    %422 = vmatmul.mubr.bf16.gmra.mrb[0].mxu0 %v387
    %v423 = vpop.f32.mrb[0].mxu0
    %v424 = vadd.f32 %v380, %v423
    %v425 = vpop.f32.mrb[0].mxu0
    %v426 = vadd.f32 %v382, %v425
    %v427 = vpop.f32.mrb[0].mxu0
    %v428 = vpop.f32.mrb[0].mxu0
    %429 = vdwg.mxu0
    %431 = vrot.lane.b32.xlu0 %v424, 32
    %v432 = vpop.permute.xlu0 %431
    %v434 = vadd.f32 %v424, %v432
    %v435 = vxor.u32 %v434, 2147483648
    %v436 = vmul.f32 %v435, 1.442695
    %v437 = vpow.pop %v436
    %v438 = vadd.f32 %v437, 1.0
    %v439 = vrcp.pop %v438
    %v440 = vmul.f32 1.0, %v439
    %442 = vrot.lane.b32.xlu0 %v426, 32
    %v443 = vpop.permute.xlu0 %442
    %v445 = vadd.f32 %v424, %v443
    %v446 = vxor.u32 %v445, 2147483648
    %v447 = vmul.f32 %v446, 1.442695
    %v448 = vpow.pop %v447
    %v449 = vadd.f32 %v448, 1.0
    %v450 = vrcp.pop %v449
    %v451 = vmul.f32 1.0, %v450
    %452 = vrot.lane.b32.xlu0 %v426, 96
    %v453 = vpop.permute.xlu0 %452
    %v455 = vmul.f32 %v440, %v453
    %457 = vrot.lane.b32.xlu0 %v455, 64
    %v458 = vpop.permute.xlu0 %457
    %v460 = vadd.f32 %v424, %v458
    %v461 = vtanh.pop %v460
    %v462 = vsub.f32 1.0, %v451
    %464 = vrot.lane.b32.xlu0 %v461, 96
    %v465 = vpop.permute.xlu0 %464
    %v467 = vmul.f32 %v462, %v465
    %v468 = vmul.f32 %v451, %v265
    %v469 = vadd.f32 %v467, %v468
    %v470 = vpack.c.bf16 %v469, %v469
    %472 = vrot.lane.b32.xlu0 %v470, 96
    %v473 = vpop.permute.xlu0 %472
    %v475 = vsel %vm113, %v473, 0
    %477 = vmatprep.subr.bf16.mxu0 0
    %478 = vmatpush1.bf16.msra.mxu0 %v278
    %479 = vmatprep.subr.bf16.mxu0 0
    %480 = vmatpush1.bf16.msra.mxu0 %v279
    %481 = vmatprep.subr.bf16.mxu0 0
    %482 = vmatpush1.bf16.msra.mxu0 0
    %483 = vmatprep.subr.bf16.mxu0 0
    %484 = vmatpush1.bf16.msra.mxu0 0
    %485 = vmatprep.subr.bf16.mxu0 0
    %486 = vmatpush1.bf16.msra.mxu0 0
    %487 = vmatprep.subr.bf16.mxu0 0
    %488 = vmatpush1.bf16.msra.mxu0 0
    %489 = vmatprep.subr.bf16.mxu0 0
    %490 = vmatpush1.bf16.msra.mxu0 0
    %491 = vmatprep.subr.bf16.mxu0 0
    %492 = vmatpush1.bf16.msra.mxu0 0
    %493 = vmatprep.subr.bf16.mxu0 0
    %494 = vmatpush1.bf16.msra.mxu0 0
    %495 = vmatprep.subr.bf16.mxu0 0
    %496 = vmatpush1.bf16.msra.mxu0 0
    %497 = vmatprep.subr.bf16.mxu0 0
    %498 = vmatpush1.bf16.msra.mxu0 0
    %499 = vmatprep.subr.bf16.mxu0 0
    %500 = vmatpush1.bf16.msra.mxu0 0
    %501 = vmatprep.subr.bf16.mxu0 0
    %502 = vmatpush1.bf16.msra.mxu0 0
    %503 = vmatprep.subr.bf16.mxu0 0
    %504 = vmatpush1.bf16.msra.mxu0 0
    %505 = vmatprep.subr.bf16.mxu0 0
    %506 = vmatpush1.bf16.msra.mxu0 0
    %507 = vmatprep.subr.bf16.mxu0 0
    %508 = vmatpush1.bf16.msra.mxu0 0
    %509 = vmatprep.mubr.bf16.mxu0 0
    %510 = vmatmul.mubr.bf16.gmra.mrb[0].mxu0 %v475
    %v511 = vpop.f32.mrb[0].mxu0
    %v512 = vadd.f32 %v85, %v511
    %v513 = vpop.f32.mrb[0].mxu0
    %v514 = vpop.f32.mrb[0].mxu0
    %v515 = vpop.f32.mrb[0].mxu0
    %516 = vdwg.mxu0
    %v517 = vsel %vm325, %v512, -inf
    %518 = vmax.index.xlane.f32.xlu0 %v517
    %v519 = vpop.xlane.xlu0 %518
    %520 = vmax.xlane.f32.xlu0 %v517
    %v521 = vpop.xlane.xlu0 %520
    %v522 = vsub.f32 %v512, %v521
    %v523 = vmul.f32 %v522, 1.442695
    %v524 = vpow.pop %v523
    %v525 = vsel %vm325, %v524, 0.0
    %526 = vadd.xlane.f32.xlu0 %v525
    %v527 = vpop.xlane.xlu0 %526
    %v528 = vlog2.pop %v527
    %v529 = vmul.f32 %v528, 0.6931472
    %v530 = vadd.f32 %v529, %v521
    %v531 = vsub.f32 %v512, %v530
    %vm532 = vcmp.eq.s32.totalorder %v67, %v519
    %v533 = vsel %vm532, 1, 0
    %v534 = vcvt.s32.f32 %v533
    %v535 = vpack.c.bf16 %v534, %v534
    %536 = vmatprep.subr.bf16.mxu0 %v106
    %537 = vmatpush1.bf16.msra.mxu0 %v105
    %538 = vmatprep.subr.bf16.mxu0 %v108
    %539 = vmatpush1.bf16.msra.mxu0 %v107
    %540 = vmatprep.subr.bf16.mxu0 0
    %541 = vmatpush1.bf16.msra.mxu0 0
    %542 = vmatprep.subr.bf16.mxu0 0
    %543 = vmatpush1.bf16.msra.mxu0 0
    %544 = vmatprep.subr.bf16.mxu0 0
    %545 = vmatpush1.bf16.msra.mxu0 0
    %546 = vmatprep.subr.bf16.mxu0 0
    %547 = vmatpush1.bf16.msra.mxu0 0
    %548 = vmatprep.subr.bf16.mxu0 0
    %549 = vmatpush1.bf16.msra.mxu0 0
    %550 = vmatprep.subr.bf16.mxu0 0
    %551 = vmatpush1.bf16.msra.mxu0 0
    %552 = vmatprep.subr.bf16.mxu0 0
    %553 = vmatpush1.bf16.msra.mxu0 0
    %554 = vmatprep.subr.bf16.mxu0 0
    %555 = vmatpush1.bf16.msra.mxu0 0
    %556 = vmatprep.subr.bf16.mxu0 0
    %557 = vmatpush1.bf16.msra.mxu0 0
    %558 = vmatprep.subr.bf16.mxu0 0
    %559 = vmatpush1.bf16.msra.mxu0 0
    %560 = vmatprep.subr.bf16.mxu0 0
    %561 = vmatpush1.bf16.msra.mxu0 0
    %562 = vmatprep.subr.bf16.mxu0 0
    %563 = vmatpush1.bf16.msra.mxu0 0
    %564 = vmatprep.subr.bf16.mxu0 0
    %565 = vmatpush1.bf16.msra.mxu0 0
    %566 = vmatprep.subr.bf16.mxu0 0
    %567 = vmatpush1.bf16.msra.mxu0 0
    %568 = vmatprep.mubr.bf16.mxu0 0
    %569 = vmatmul.mubr.bf16.gmra.mrb[0].mxu0 %v475
    %v570 = vpop.f32.mrb[0].mxu0
    %v571 = vadd.f32 0.0, %v570
    %v572 = vpop.f32.mrb[0].mxu0
    %v573 = vadd.f32 0.0, %v572
    %v574 = vpop.f32.mrb[0].mxu0
    %v575 = vpop.f32.mrb[0].mxu0
    %576 = vdwg.mxu0
    %v578 = vsel %vm113, %v535, 0
    %580 = vmatprep.subr.bf16.mxu0 %v171
    %581 = vmatpush1.bf16.msra.mxu0 %v170
    %582 = vmatprep.subr.bf16.mxu0 %v173
    %583 = vmatpush1.bf16.msra.mxu0 %v172
    %584 = vmatprep.subr.bf16.mxu0 0
    %585 = vmatpush1.bf16.msra.mxu0 0
    %586 = vmatprep.subr.bf16.mxu0 0
    %587 = vmatpush1.bf16.msra.mxu0 0
    %588 = vmatprep.subr.bf16.mxu0 0
    %589 = vmatpush1.bf16.msra.mxu0 0
    %590 = vmatprep.subr.bf16.mxu0 0
    %591 = vmatpush1.bf16.msra.mxu0 0
    %592 = vmatprep.subr.bf16.mxu0 0
    %593 = vmatpush1.bf16.msra.mxu0 0
    %594 = vmatprep.subr.bf16.mxu0 0
    %595 = vmatpush1.bf16.msra.mxu0 0
    %596 = vmatprep.subr.bf16.mxu0 0
    %597 = vmatpush1.bf16.msra.mxu0 0
    %598 = vmatprep.subr.bf16.mxu0 0
    %599 = vmatpush1.bf16.msra.mxu0 0
    %600 = vmatprep.subr.bf16.mxu0 0
    %601 = vmatpush1.bf16.msra.mxu0 0
    %602 = vmatprep.subr.bf16.mxu0 0
    %603 = vmatpush1.bf16.msra.mxu0 0
    %604 = vmatprep.subr.bf16.mxu0 0
    %605 = vmatpush1.bf16.msra.mxu0 0
    %606 = vmatprep.subr.bf16.mxu0 0
    %607 = vmatpush1.bf16.msra.mxu0 0
    %608 = vmatprep.subr.bf16.mxu0 0
    %609 = vmatpush1.bf16.msra.mxu0 0
    %610 = vmatprep.subr.bf16.mxu0 0
    %611 = vmatpush1.bf16.msra.mxu0 0
    %612 = vmatprep.mubr.bf16.mxu0 0
    %613 = vmatmul.mubr.bf16.gmra.mrb[0].mxu0 %v578
    %v614 = vpop.f32.mrb[0].mxu0
    %v615 = vadd.f32 %v571, %v614
    %v616 = vpop.f32.mrb[0].mxu0
    %v617 = vadd.f32 %v573, %v616
    %v618 = vpop.f32.mrb[0].mxu0
    %v619 = vpop.f32.mrb[0].mxu0
    %620 = vdwg.mxu0
    %622 = vrot.lane.b32.xlu0 %v615, 32
    %v623 = vpop.permute.xlu0 %622
    %v625 = vadd.f32 %v615, %v623
    %v626 = vxor.u32 %v625, 2147483648
    %v627 = vmul.f32 %v626, 1.442695
    %v628 = vpow.pop %v627
    %v629 = vadd.f32 %v628, 1.0
    %v630 = vrcp.pop %v629
    %v631 = vmul.f32 1.0, %v630
    %633 = vrot.lane.b32.xlu0 %v617, 32
    %v634 = vpop.permute.xlu0 %633
    %v636 = vadd.f32 %v615, %v634
    %v637 = vxor.u32 %v636, 2147483648
    %v638 = vmul.f32 %v637, 1.442695
    %v639 = vpow.pop %v638
    %v640 = vadd.f32 %v639, 1.0
    %v641 = vrcp.pop %v640
    %v642 = vmul.f32 1.0, %v641
    %643 = vrot.lane.b32.xlu0 %v617, 96
    %v644 = vpop.permute.xlu0 %643
    %v646 = vmul.f32 %v631, %v644
    %648 = vrot.lane.b32.xlu0 %v646, 64
    %v649 = vpop.permute.xlu0 %648
    %v651 = vadd.f32 %v615, %v649
    %v652 = vtanh.pop %v651
    %v653 = vsub.f32 1.0, %v642
    %655 = vrot.lane.b32.xlu0 %v652, 96
    %v656 = vpop.permute.xlu0 %655
    %v658 = vmul.f32 %v653, %v656
    %v659 = vmul.f32 %v642, %v469
    %v660 = vadd.f32 %v658, %v659
    %v661 = vpack.c.bf16 %v660, %v660
    %663 = vrot.lane.b32.xlu0 %v661, 96
    %v664 = vpop.permute.xlu0 %663
    %v666 = vsel %vm113, %v664, 0
    %668 = vmatprep.subr.bf16.mxu0 0
    %669 = vmatpush1.bf16.msra.mxu0 %v278
    %670 = vmatprep.subr.bf16.mxu0 0
    %671 = vmatpush1.bf16.msra.mxu0 %v279
    %672 = vmatprep.subr.bf16.mxu0 0
    %673 = vmatpush1.bf16.msra.mxu0 0
    %674 = vmatprep.subr.bf16.mxu0 0
    %675 = vmatpush1.bf16.msra.mxu0 0
    %676 = vmatprep.subr.bf16.mxu0 0
    %677 = vmatpush1.bf16.msra.mxu0 0
    %678 = vmatprep.subr.bf16.mxu0 0
    %679 = vmatpush1.bf16.msra.mxu0 0
    %680 = vmatprep.subr.bf16.mxu0 0
    %681 = vmatpush1.bf16.msra.mxu0 0
    %682 = vmatprep.subr.bf16.mxu0 0
    %683 = vmatpush1.bf16.msra.mxu0 0
    %684 = vmatprep.subr.bf16.mxu0 0
    %685 = vmatpush1.bf16.msra.mxu0 0
    %686 = vmatprep.subr.bf16.mxu0 0
    %687 = vmatpush1.bf16.msra.mxu0 0
    %688 = vmatprep.subr.bf16.mxu0 0
    %689 = vmatpush1.bf16.msra.mxu0 0
    %690 = vmatprep.subr.bf16.mxu0 0
    %691 = vmatpush1.bf16.msra.mxu0 0
    %692 = vmatprep.subr.bf16.mxu0 0
    %693 = vmatpush1.bf16.msra.mxu0 0
    %694 = vmatprep.subr.bf16.mxu0 0
    %695 = vmatpush1.bf16.msra.mxu0 0
    %696 = vmatprep.subr.bf16.mxu0 0
    %697 = vmatpush1.bf16.msra.mxu0 0
    %698 = vmatprep.subr.bf16.mxu0 0
    %699 = vmatpush1.bf16.msra.mxu0 0
    %700 = vmatprep.mubr.bf16.mxu0 0
    %701 = vmatmul.mubr.bf16.gmra.mrb[0].mxu0 %v666
    %v702 = vpop.f32.mrb[0].mxu0
    %v703 = vadd.f32 %v85, %v702
    %v704 = vpop.f32.mrb[0].mxu0
    %v705 = vpop.f32.mrb[0].mxu0
    %v706 = vpop.f32.mrb[0].mxu0
    %707 = vdwg.mxu0
    %v708 = vsel %vm325, %v703, -inf
    %709 = vmax.index.xlane.f32.xlu0 %v708
    %v710 = vpop.xlane.xlu0 %709
    %711 = vmax.xlane.f32.xlu0 %v708
    %v712 = vpop.xlane.xlu0 %711
    %v713 = vsub.f32 %v703, %v712
    %v714 = vmul.f32 %v713, 1.442695
    %v715 = vpow.pop %v714
    %v716 = vsel %vm325, %v715, 0.0
    %717 = vadd.xlane.f32.xlu0 %v716
    %v718 = vpop.xlane.xlu0 %717
    %v719 = vlog2.pop %v718
    %v720 = vmul.f32 %v719, 0.6931472
    %v721 = vadd.f32 %v720, %v712
    %v722 = vsub.f32 %v703, %v721
    %vm723 = vcmp.eq.s32.totalorder %v67, %v710
    %v724 = vsel %vm723, 1, 0
    %v725 = vcvt.s32.f32 %v724
    %v726 = vpack.c.bf16 %v725, %v725
    %727 = vmatprep.subr.bf16.mxu0 %v106
    %728 = vmatpush1.bf16.msra.mxu0 %v105
    %729 = vmatprep.subr.bf16.mxu0 %v108
    %730 = vmatpush1.bf16.msra.mxu0 %v107
    %731 = vmatprep.subr.bf16.mxu0 0
    %732 = vmatpush1.bf16.msra.mxu0 0
    %733 = vmatprep.subr.bf16.mxu0 0
    %734 = vmatpush1.bf16.msra.mxu0 0
    %735 = vmatprep.subr.bf16.mxu0 0
    %736 = vmatpush1.bf16.msra.mxu0 0
    %737 = vmatprep.subr.bf16.mxu0 0
    %738 = vmatpush1.bf16.msra.mxu0 0
    %739 = vmatprep.subr.bf16.mxu0 0
    %740 = vmatpush1.bf16.msra.mxu0 0
    %741 = vmatprep.subr.bf16.mxu0 0
    %742 = vmatpush1.bf16.msra.mxu0 0
    %743 = vmatprep.subr.bf16.mxu0 0
    %744 = vmatpush1.bf16.msra.mxu0 0
    %745 = vmatprep.subr.bf16.mxu0 0
    %746 = vmatpush1.bf16.msra.mxu0 0
    %747 = vmatprep.subr.bf16.mxu0 0
    %748 = vmatpush1.bf16.msra.mxu0 0
    %749 = vmatprep.subr.bf16.mxu0 0
    %750 = vmatpush1.bf16.msra.mxu0 0
    %751 = vmatprep.subr.bf16.mxu0 0
    %752 = vmatpush1.bf16.msra.mxu0 0
    %753 = vmatprep.subr.bf16.mxu0 0
    %754 = vmatpush1.bf16.msra.mxu0 0
    %755 = vmatprep.subr.bf16.mxu0 0
    %756 = vmatpush1.bf16.msra.mxu0 0
    %757 = vmatprep.subr.bf16.mxu0 0
    %758 = vmatpush1.bf16.msra.mxu0 0
    %759 = vmatprep.mubr.bf16.mxu0 0
    %760 = vmatmul.mubr.bf16.gmra.mrb[0].mxu0 %v666
    %v761 = vpop.f32.mrb[0].mxu0
    %v762 = vadd.f32 0.0, %v761
    %v763 = vpop.f32.mrb[0].mxu0
    %v764 = vadd.f32 0.0, %v763
    %v765 = vpop.f32.mrb[0].mxu0
    %v766 = vpop.f32.mrb[0].mxu0
    %767 = vdwg.mxu0
    %v769 = vsel %vm113, %v726, 0
    %771 = vmatprep.subr.bf16.mxu0 %v171
    %772 = vmatpush1.bf16.msra.mxu0 %v170
    %773 = vmatprep.subr.bf16.mxu0 %v173
    %774 = vmatpush1.bf16.msra.mxu0 %v172
    %775 = vmatprep.subr.bf16.mxu0 0
    %776 = vmatpush1.bf16.msra.mxu0 0
    %777 = vmatprep.subr.bf16.mxu0 0
    %778 = vmatpush1.bf16.msra.mxu0 0
    %779 = vmatprep.subr.bf16.mxu0 0
    %780 = vmatpush1.bf16.msra.mxu0 0
    %781 = vmatprep.subr.bf16.mxu0 0
    %782 = vmatpush1.bf16.msra.mxu0 0
    %783 = vmatprep.subr.bf16.mxu0 0
    %784 = vmatpush1.bf16.msra.mxu0 0
    %785 = vmatprep.subr.bf16.mxu0 0
    %786 = vmatpush1.bf16.msra.mxu0 0
    %787 = vmatprep.subr.bf16.mxu0 0
    %788 = vmatpush1.bf16.msra.mxu0 0
    %789 = vmatprep.subr.bf16.mxu0 0
    %790 = vmatpush1.bf16.msra.mxu0 0
    %791 = vmatprep.subr.bf16.mxu0 0
    %792 = vmatpush1.bf16.msra.mxu0 0
    %793 = vmatprep.subr.bf16.mxu0 0
    %794 = vmatpush1.bf16.msra.mxu0 0
    %795 = vmatprep.subr.bf16.mxu0 0
    %796 = vmatpush1.bf16.msra.mxu0 0
    %797 = vmatprep.subr.bf16.mxu0 0
    %798 = vmatpush1.bf16.msra.mxu0 0
    %799 = vmatprep.subr.bf16.mxu0 0
    %800 = vmatpush1.bf16.msra.mxu0 0
    %801 = vmatprep.subr.bf16.mxu0 0
    %802 = vmatpush1.bf16.msra.mxu0 0
    %803 = vmatprep.mubr.bf16.mxu0 0
    %804 = vmatmul.mubr.bf16.gmra.mrb[0].mxu0 %v769
    %v805 = vpop.f32.mrb[0].mxu0
    %v806 = vadd.f32 %v762, %v805
    %v807 = vpop.f32.mrb[0].mxu0
    %v808 = vadd.f32 %v764, %v807
    %v809 = vpop.f32.mrb[0].mxu0
    %v810 = vpop.f32.mrb[0].mxu0
    %811 = vdwg.mxu0
    %813 = vrot.lane.b32.xlu0 %v806, 32
    %v814 = vpop.permute.xlu0 %813
    %v816 = vadd.f32 %v806, %v814
    %v817 = vxor.u32 %v816, 2147483648
    %v818 = vmul.f32 %v817, 1.442695
    %v819 = vpow.pop %v818
    %v820 = vadd.f32 %v819, 1.0
    %v821 = vrcp.pop %v820
    %v822 = vmul.f32 1.0, %v821
    %824 = vrot.lane.b32.xlu0 %v808, 32
    %v825 = vpop.permute.xlu0 %824
    %v827 = vadd.f32 %v806, %v825
    %v828 = vxor.u32 %v827, 2147483648
    %v829 = vmul.f32 %v828, 1.442695
    %v830 = vpow.pop %v829
    %v831 = vadd.f32 %v830, 1.0
    %v832 = vrcp.pop %v831
    %v833 = vmul.f32 1.0, %v832
    %834 = vrot.lane.b32.xlu0 %v808, 96
    %v835 = vpop.permute.xlu0 %834
    %v837 = vmul.f32 %v822, %v835
    %839 = vrot.lane.b32.xlu0 %v837, 64
    %v840 = vpop.permute.xlu0 %839
    %v842 = vadd.f32 %v806, %v840
    %v843 = vtanh.pop %v842
    %v844 = vsub.f32 1.0, %v833
    %846 = vrot.lane.b32.xlu0 %v843, 96
    %v847 = vpop.permute.xlu0 %846
    %v849 = vmul.f32 %v844, %v847
    %v850 = vmul.f32 %v833, %v660
    %v851 = vadd.f32 %v849, %v850
    %v852 = vpack.c.bf16 %v851, %v851
    %854 = vrot.lane.b32.xlu0 %v852, 96
    %v855 = vpop.permute.xlu0 %854
    %v857 = vsel %vm113, %v855, 0
    %859 = vmatprep.subr.bf16.mxu0 0
    %860 = vmatpush1.bf16.msra.mxu0 %v278
    %861 = vmatprep.subr.bf16.mxu0 0
    %862 = vmatpush1.bf16.msra.mxu0 %v279
    %863 = vmatprep.subr.bf16.mxu0 0
    %864 = vmatpush1.bf16.msra.mxu0 0
    %865 = vmatprep.subr.bf16.mxu0 0
    %866 = vmatpush1.bf16.msra.mxu0 0
    %867 = vmatprep.subr.bf16.mxu0 0
    %868 = vmatpush1.bf16.msra.mxu0 0
    %869 = vmatprep.subr.bf16.mxu0 0
    %870 = vmatpush1.bf16.msra.mxu0 0
    %871 = vmatprep.subr.bf16.mxu0 0
    %872 = vmatpush1.bf16.msra.mxu0 0
    %873 = vmatprep.subr.bf16.mxu0 0
    %874 = vmatpush1.bf16.msra.mxu0 0
    %875 = vmatprep.subr.bf16.mxu0 0
    %876 = vmatpush1.bf16.msra.mxu0 0
    %877 = vmatprep.subr.bf16.mxu0 0
    %878 = vmatpush1.bf16.msra.mxu0 0
    %879 = vmatprep.subr.bf16.mxu0 0
    %880 = vmatpush1.bf16.msra.mxu0 0
    %881 = vmatprep.subr.bf16.mxu0 0
    %882 = vmatpush1.bf16.msra.mxu0 0
    %883 = vmatprep.subr.bf16.mxu0 0
    %884 = vmatpush1.bf16.msra.mxu0 0
    %885 = vmatprep.subr.bf16.mxu0 0
    %886 = vmatpush1.bf16.msra.mxu0 0
    %887 = vmatprep.subr.bf16.mxu0 0
    %888 = vmatpush1.bf16.msra.mxu0 0
    %889 = vmatprep.subr.bf16.mxu0 0
    %890 = vmatpush1.bf16.msra.mxu0 0
    %891 = vmatprep.mubr.bf16.mxu0 0
    %892 = vmatmul.mubr.bf16.gmra.mrb[0].mxu0 %v857
    %v893 = vpop.f32.mrb[0].mxu0
    %v894 = vadd.f32 %v85, %v893
    %v895 = vpop.f32.mrb[0].mxu0
    %v896 = vpop.f32.mrb[0].mxu0
    %v897 = vpop.f32.mrb[0].mxu0
    %898 = vdwg.mxu0
    %v899 = vsel %vm325, %v894, -inf
    %900 = vmax.index.xlane.f32.xlu0 %v899
    %v901 = vpop.xlane.xlu0 %900
    %902 = vmax.xlane.f32.xlu0 %v899
    %v903 = vpop.xlane.xlu0 %902
    %v904 = vsub.f32 %v894, %v903
    %v905 = vmul.f32 %v904, 1.442695
    %v906 = vpow.pop %v905
    %v907 = vsel %vm325, %v906, 0.0
    %908 = vadd.xlane.f32.xlu0 %v907
    %v909 = vpop.xlane.xlu0 %908
    %v910 = vlog2.pop %v909
    %v911 = vmul.f32 %v910, 0.6931472
    %v912 = vadd.f32 %v911, %v903
    %v913 = vsub.f32 %v894, %v912
    %vm914 = vcmp.eq.s32.totalorder %v67, %v901
    %v915 = vsel %vm914, 1, 0
    %v916 = vcvt.s32.f32 %v915
    %v917 = vpack.c.bf16 %v916, %v916
    %918 = vmatprep.subr.bf16.mxu0 %v106
    %919 = vmatpush1.bf16.msra.mxu0 %v105
    %920 = vmatprep.subr.bf16.mxu0 %v108
    %921 = vmatpush1.bf16.msra.mxu0 %v107
    %922 = vmatprep.subr.bf16.mxu0 0
    %923 = vmatpush1.bf16.msra.mxu0 0
    %924 = vmatprep.subr.bf16.mxu0 0
    %925 = vmatpush1.bf16.msra.mxu0 0
    %926 = vmatprep.subr.bf16.mxu0 0
    %927 = vmatpush1.bf16.msra.mxu0 0
    %928 = vmatprep.subr.bf16.mxu0 0
    %929 = vmatpush1.bf16.msra.mxu0 0
    %930 = vmatprep.subr.bf16.mxu0 0
    %931 = vmatpush1.bf16.msra.mxu0 0
    %932 = vmatprep.subr.bf16.mxu0 0
    %933 = vmatpush1.bf16.msra.mxu0 0
    %934 = vmatprep.subr.bf16.mxu0 0
    %935 = vmatpush1.bf16.msra.mxu0 0
    %936 = vmatprep.subr.bf16.mxu0 0
    %937 = vmatpush1.bf16.msra.mxu0 0
    %938 = vmatprep.subr.bf16.mxu0 0
    %939 = vmatpush1.bf16.msra.mxu0 0
    %940 = vmatprep.subr.bf16.mxu0 0
    %941 = vmatpush1.bf16.msra.mxu0 0
    %942 = vmatprep.subr.bf16.mxu0 0
    %943 = vmatpush1.bf16.msra.mxu0 0
    %944 = vmatprep.subr.bf16.mxu0 0
    %945 = vmatpush1.bf16.msra.mxu0 0
    %946 = vmatprep.subr.bf16.mxu0 0
    %947 = vmatpush1.bf16.msra.mxu0 0
    %948 = vmatprep.subr.bf16.mxu0 0
    %949 = vmatpush1.bf16.msra.mxu0 0
    %950 = vmatprep.mubr.bf16.mxu0 0
    %951 = vmatmul.mubr.bf16.gmra.mrb[0].mxu0 %v857
    %v952 = vpop.f32.mrb[0].mxu0
    %v953 = vadd.f32 0.0, %v952
    %v954 = vpop.f32.mrb[0].mxu0
    %v955 = vadd.f32 0.0, %v954
    %v956 = vpop.f32.mrb[0].mxu0
    %v957 = vpop.f32.mrb[0].mxu0
    %958 = vdwg.mxu0
    %v960 = vsel %vm113, %v917, 0
    %962 = vmatprep.subr.bf16.mxu0 %v171
    %963 = vmatpush1.bf16.msra.mxu0 %v170
    %964 = vmatprep.subr.bf16.mxu0 %v173
    %965 = vmatpush1.bf16.msra.mxu0 %v172
    %966 = vmatprep.subr.bf16.mxu0 0
    %967 = vmatpush1.bf16.msra.mxu0 0
    %968 = vmatprep.subr.bf16.mxu0 0
    %969 = vmatpush1.bf16.msra.mxu0 0
    %970 = vmatprep.subr.bf16.mxu0 0
    %971 = vmatpush1.bf16.msra.mxu0 0
    %972 = vmatprep.subr.bf16.mxu0 0
    %973 = vmatpush1.bf16.msra.mxu0 0
    %974 = vmatprep.subr.bf16.mxu0 0
    %975 = vmatpush1.bf16.msra.mxu0 0
    %976 = vmatprep.subr.bf16.mxu0 0
    %977 = vmatpush1.bf16.msra.mxu0 0
    %978 = vmatprep.subr.bf16.mxu0 0
    %979 = vmatpush1.bf16.msra.mxu0 0
    %980 = vmatprep.subr.bf16.mxu0 0
    %981 = vmatpush1.bf16.msra.mxu0 0
    %982 = vmatprep.subr.bf16.mxu0 0
    %983 = vmatpush1.bf16.msra.mxu0 0
    %984 = vmatprep.subr.bf16.mxu0 0
    %985 = vmatpush1.bf16.msra.mxu0 0
    %986 = vmatprep.subr.bf16.mxu0 0
    %987 = vmatpush1.bf16.msra.mxu0 0
    %988 = vmatprep.subr.bf16.mxu0 0
    %989 = vmatpush1.bf16.msra.mxu0 0
    %990 = vmatprep.subr.bf16.mxu0 0
    %991 = vmatpush1.bf16.msra.mxu0 0
    %992 = vmatprep.subr.bf16.mxu0 0
    %993 = vmatpush1.bf16.msra.mxu0 0
    %994 = vmatprep.mubr.bf16.mxu0 0
    %995 = vmatmul.mubr.bf16.gmra.mrb[0].mxu0 %v960
    %v996 = vpop.f32.mrb[0].mxu0
    %v997 = vadd.f32 %v953, %v996
    %v998 = vpop.f32.mrb[0].mxu0
    %v999 = vadd.f32 %v955, %v998
    %v1000 = vpop.f32.mrb[0].mxu0
    %v1001 = vpop.f32.mrb[0].mxu0
    %1002 = vdwg.mxu0
    %1004 = vrot.lane.b32.xlu0 %v997, 32
    %v1005 = vpop.permute.xlu0 %1004
    %v1007 = vadd.f32 %v997, %v1005
    %v1008 = vxor.u32 %v1007, 2147483648
    %v1009 = vmul.f32 %v1008, 1.442695
    %v1010 = vpow.pop %v1009
    %v1011 = vadd.f32 %v1010, 1.0
    %v1012 = vrcp.pop %v1011
    %v1013 = vmul.f32 1.0, %v1012
    %1015 = vrot.lane.b32.xlu0 %v999, 32
    %v1016 = vpop.permute.xlu0 %1015
    %v1018 = vadd.f32 %v997, %v1016
    %v1019 = vxor.u32 %v1018, 2147483648
    %v1020 = vmul.f32 %v1019, 1.442695
    %v1021 = vpow.pop %v1020
    %v1022 = vadd.f32 %v1021, 1.0
    %v1023 = vrcp.pop %v1022
    %v1024 = vmul.f32 1.0, %v1023
    %1025 = vrot.lane.b32.xlu0 %v999, 96
    %v1026 = vpop.permute.xlu0 %1025
    %v1028 = vmul.f32 %v1013, %v1026
    %1030 = vrot.lane.b32.xlu0 %v1028, 64
    %v1031 = vpop.permute.xlu0 %1030
    %v1033 = vadd.f32 %v997, %v1031
    %v1034 = vtanh.pop %v1033
    %v1035 = vsub.f32 1.0, %v1024
    %1037 = vrot.lane.b32.xlu0 %v1034, 96
    %v1038 = vpop.permute.xlu0 %1037
    %v1040 = vmul.f32 %v1035, %v1038
    %v1041 = vmul.f32 %v1024, %v851
    %v1042 = vadd.f32 %v1040, %v1041
    %v1043 = vpack.c.bf16 %v1042, %v1042
    %1045 = vrot.lane.b32.xlu0 %v1043, 96
    %v1046 = vpop.permute.xlu0 %1045
    %v1048 = vsel %vm113, %v1046, 0
    %1050 = vmatprep.subr.bf16.mxu0 0
    %1051 = vmatpush1.bf16.msra.mxu0 %v278
    %1052 = vmatprep.subr.bf16.mxu0 0
    %1053 = vmatpush1.bf16.msra.mxu0 %v279
    %1054 = vmatprep.subr.bf16.mxu0 0
    %1055 = vmatpush1.bf16.msra.mxu0 0
    %1056 = vmatprep.subr.bf16.mxu0 0
    %1057 = vmatpush1.bf16.msra.mxu0 0
    %1058 = vmatprep.subr.bf16.mxu0 0
    %1059 = vmatpush1.bf16.msra.mxu0 0
    %1060 = vmatprep.subr.bf16.mxu0 0
    %1061 = vmatpush1.bf16.msra.mxu0 0
    %1062 = vmatprep.subr.bf16.mxu0 0
    %1063 = vmatpush1.bf16.msra.mxu0 0
    %1064 = vmatprep.subr.bf16.mxu0 0
    %1065 = vmatpush1.bf16.msra.mxu0 0
    %1066 = vmatprep.subr.bf16.mxu0 0
    %1067 = vmatpush1.bf16.msra.mxu0 0
    %1068 = vmatprep.subr.bf16.mxu0 0
    %1069 = vmatpush1.bf16.msra.mxu0 0
    %1070 = vmatprep.subr.bf16.mxu0 0
    %1071 = vmatpush1.bf16.msra.mxu0 0
    %1072 = vmatprep.subr.bf16.mxu0 0
    %1073 = vmatpush1.bf16.msra.mxu0 0
    %1074 = vmatprep.subr.bf16.mxu0 0
    %1075 = vmatpush1.bf16.msra.mxu0 0
    %1076 = vmatprep.subr.bf16.mxu0 0
    %1077 = vmatpush1.bf16.msra.mxu0 0
    %1078 = vmatprep.subr.bf16.mxu0 0
    %1079 = vmatpush1.bf16.msra.mxu0 0
    %1080 = vmatprep.subr.bf16.mxu0 0
    %1081 = vmatpush1.bf16.msra.mxu0 0
    %1082 = vmatprep.mubr.bf16.mxu0 0
    %1083 = vmatmul.mubr.bf16.gmra.mrb[0].mxu0 %v1048
    %v1084 = vpop.f32.mrb[0].mxu0
    %v1085 = vadd.f32 %v85, %v1084
    %v1086 = vpop.f32.mrb[0].mxu0
    %v1087 = vpop.f32.mrb[0].mxu0
    %v1088 = vpop.f32.mrb[0].mxu0
    %1089 = vdwg.mxu0
    %v1090 = vsel %vm325, %v1085, -inf
    %1091 = vmax.index.xlane.f32.xlu0 %v1090
    %v1092 = vpop.xlane.xlu0 %1091
    %1093 = vmax.xlane.f32.xlu0 %v1090
    %v1094 = vpop.xlane.xlu0 %1093
    %v1095 = vsub.f32 %v1085, %v1094
    %v1096 = vmul.f32 %v1095, 1.442695
    %v1097 = vpow.pop %v1096
    %v1098 = vsel %vm325, %v1097, 0.0
    %1099 = vadd.xlane.f32.xlu0 %v1098
    %v1100 = vpop.xlane.xlu0 %1099
    %v1101 = vlog2.pop %v1100
    %v1102 = vmul.f32 %v1101, 0.6931472
    %v1103 = vadd.f32 %v1102, %v1094
    %v1104 = vsub.f32 %v1085, %v1103
    %vm1105 = vcmp.eq.s32.totalorder %v67, %v1092
    %v1106 = vsel %vm1105, 1, 0
    %v1107 = vcvt.s32.f32 %v1106
    %v1108 = vpack.c.bf16 %v1107, %v1107
    %1109 = vmatprep.subr.bf16.mxu0 %v106
    %1110 = vmatpush1.bf16.msra.mxu0 %v105
    %1111 = vmatprep.subr.bf16.mxu0 %v108
    %1112 = vmatpush1.bf16.msra.mxu0 %v107
    %1113 = vmatprep.subr.bf16.mxu0 0
    %1114 = vmatpush1.bf16.msra.mxu0 0
    %1115 = vmatprep.subr.bf16.mxu0 0
    %1116 = vmatpush1.bf16.msra.mxu0 0
    %1117 = vmatprep.subr.bf16.mxu0 0
    %1118 = vmatpush1.bf16.msra.mxu0 0
    %1119 = vmatprep.subr.bf16.mxu0 0
    %1120 = vmatpush1.bf16.msra.mxu0 0
    %1121 = vmatprep.subr.bf16.mxu0 0
    %1122 = vmatpush1.bf16.msra.mxu0 0
    %1123 = vmatprep.subr.bf16.mxu0 0
    %1124 = vmatpush1.bf16.msra.mxu0 0
    %1125 = vmatprep.subr.bf16.mxu0 0
    %1126 = vmatpush1.bf16.msra.mxu0 0
    %1127 = vmatprep.subr.bf16.mxu0 0
    %1128 = vmatpush1.bf16.msra.mxu0 0
    %1129 = vmatprep.subr.bf16.mxu0 0
    %1130 = vmatpush1.bf16.msra.mxu0 0
    %1131 = vmatprep.subr.bf16.mxu0 0
    %1132 = vmatpush1.bf16.msra.mxu0 0
    %1133 = vmatprep.subr.bf16.mxu0 0
    %1134 = vmatpush1.bf16.msra.mxu0 0
    %1135 = vmatprep.subr.bf16.mxu0 0
    %1136 = vmatpush1.bf16.msra.mxu0 0
    %1137 = vmatprep.subr.bf16.mxu0 0
    %1138 = vmatpush1.bf16.msra.mxu0 0
    %1139 = vmatprep.subr.bf16.mxu0 0
    %1140 = vmatpush1.bf16.msra.mxu0 0
    %1141 = vmatprep.mubr.bf16.mxu0 0
    %1142 = vmatmul.mubr.bf16.gmra.mrb[0].mxu0 %v1048
    %v1143 = vpop.f32.mrb[0].mxu0
    %v1144 = vadd.f32 0.0, %v1143
    %v1145 = vpop.f32.mrb[0].mxu0
    %v1146 = vadd.f32 0.0, %v1145
    %v1147 = vpop.f32.mrb[0].mxu0
    %v1148 = vpop.f32.mrb[0].mxu0
    %1149 = vdwg.mxu0
    %v1151 = vsel %vm113, %v1108, 0
    %1153 = vmatprep.subr.bf16.mxu0 %v171
    %1154 = vmatpush1.bf16.msra.mxu0 %v170
    %1155 = vmatprep.subr.bf16.mxu0 %v173
    %1156 = vmatpush1.bf16.msra.mxu0 %v172
    %1157 = vmatprep.subr.bf16.mxu0 0
    %1158 = vmatpush1.bf16.msra.mxu0 0
    %1159 = vmatprep.subr.bf16.mxu0 0
    %1160 = vmatpush1.bf16.msra.mxu0 0
    %1161 = vmatprep.subr.bf16.mxu0 0
    %1162 = vmatpush1.bf16.msra.mxu0 0
    %1163 = vmatprep.subr.bf16.mxu0 0
    %1164 = vmatpush1.bf16.msra.mxu0 0
    %1165 = vmatprep.subr.bf16.mxu0 0
    %1166 = vmatpush1.bf16.msra.mxu0 0
    %1167 = vmatprep.subr.bf16.mxu0 0
    %1168 = vmatpush1.bf16.msra.mxu0 0
    %1169 = vmatprep.subr.bf16.mxu0 0
    %1170 = vmatpush1.bf16.msra.mxu0 0
    %1171 = vmatprep.subr.bf16.mxu0 0
    %1172 = vmatpush1.bf16.msra.mxu0 0
    %1173 = vmatprep.subr.bf16.mxu0 0
    %1174 = vmatpush1.bf16.msra.mxu0 0
    %1175 = vmatprep.subr.bf16.mxu0 0
    %1176 = vmatpush1.bf16.msra.mxu0 0
    %1177 = vmatprep.subr.bf16.mxu0 0
    %1178 = vmatpush1.bf16.msra.mxu0 0
    %1179 = vmatprep.subr.bf16.mxu0 0
    %1180 = vmatpush1.bf16.msra.mxu0 0
    %1181 = vmatprep.subr.bf16.mxu0 0
    %1182 = vmatpush1.bf16.msra.mxu0 0
    %1183 = vmatprep.subr.bf16.mxu0 0
    %1184 = vmatpush1.bf16.msra.mxu0 0
    %1185 = vmatprep.mubr.bf16.mxu0 0
    %1186 = vmatmul.mubr.bf16.gmra.mrb[0].mxu0 %v1151
    %v1187 = vpop.f32.mrb[0].mxu0
    %v1188 = vadd.f32 %v1144, %v1187
    %v1189 = vpop.f32.mrb[0].mxu0
    %v1190 = vadd.f32 %v1146, %v1189
    %v1191 = vpop.f32.mrb[0].mxu0
    %v1192 = vpop.f32.mrb[0].mxu0
    %1193 = vdwg.mxu0
    %1195 = vrot.lane.b32.xlu0 %v1188, 32
    %v1196 = vpop.permute.xlu0 %1195
    %v1198 = vadd.f32 %v1188, %v1196
    %v1199 = vxor.u32 %v1198, 2147483648
    %v1200 = vmul.f32 %v1199, 1.442695
    %v1201 = vpow.pop %v1200
    %v1202 = vadd.f32 %v1201, 1.0
    %v1203 = vrcp.pop %v1202
    %v1204 = vmul.f32 1.0, %v1203
    %1206 = vrot.lane.b32.xlu0 %v1190, 32
    %v1207 = vpop.permute.xlu0 %1206
    %v1209 = vadd.f32 %v1188, %v1207
    %v1210 = vxor.u32 %v1209, 2147483648
    %v1211 = vmul.f32 %v1210, 1.442695
    %v1212 = vpow.pop %v1211
    %v1213 = vadd.f32 %v1212, 1.0
    %v1214 = vrcp.pop %v1213
    %v1215 = vmul.f32 1.0, %v1214
    %1216 = vrot.lane.b32.xlu0 %v1190, 96
    %v1217 = vpop.permute.xlu0 %1216
    %v1219 = vmul.f32 %v1204, %v1217
    %1221 = vrot.lane.b32.xlu0 %v1219, 64
    %v1222 = vpop.permute.xlu0 %1221
    %v1224 = vadd.f32 %v1188, %v1222
    %v1225 = vtanh.pop %v1224
    %v1226 = vsub.f32 1.0, %v1215
    %1228 = vrot.lane.b32.xlu0 %v1225, 96
    %v1229 = vpop.permute.xlu0 %1228
    %v1231 = vmul.f32 %v1226, %v1229
    %v1232 = vmul.f32 %v1215, %v1042
    %v1233 = vadd.f32 %v1231, %v1232
    %v1234 = vpack.c.bf16 %v1233, %v1233
    %1236 = vrot.lane.b32.xlu0 %v1234, 96
    %v1237 = vpop.permute.xlu0 %1236
    %v1239 = vsel %vm113, %v1237, 0
    %1241 = vmatprep.subr.bf16.mxu0 0
    %1242 = vmatpush1.bf16.msra.mxu0 %v278
    %1243 = vmatprep.subr.bf16.mxu0 0
    %1244 = vmatpush1.bf16.msra.mxu0 %v279
    %1245 = vmatprep.subr.bf16.mxu0 0
    %1246 = vmatpush1.bf16.msra.mxu0 0
    %1247 = vmatprep.subr.bf16.mxu0 0
    %1248 = vmatpush1.bf16.msra.mxu0 0
    %1249 = vmatprep.subr.bf16.mxu0 0
    %1250 = vmatpush1.bf16.msra.mxu0 0
    %1251 = vmatprep.subr.bf16.mxu0 0
    %1252 = vmatpush1.bf16.msra.mxu0 0
    %1253 = vmatprep.subr.bf16.mxu0 0
    %1254 = vmatpush1.bf16.msra.mxu0 0
    %1255 = vmatprep.subr.bf16.mxu0 0
    %1256 = vmatpush1.bf16.msra.mxu0 0
    %1257 = vmatprep.subr.bf16.mxu0 0
    %1258 = vmatpush1.bf16.msra.mxu0 0
    %1259 = vmatprep.subr.bf16.mxu0 0
    %1260 = vmatpush1.bf16.msra.mxu0 0
    %1261 = vmatprep.subr.bf16.mxu0 0
    %1262 = vmatpush1.bf16.msra.mxu0 0
    %1263 = vmatprep.subr.bf16.mxu0 0
    %1264 = vmatpush1.bf16.msra.mxu0 0
    %1265 = vmatprep.subr.bf16.mxu0 0
    %1266 = vmatpush1.bf16.msra.mxu0 0
    %1267 = vmatprep.subr.bf16.mxu0 0
    %1268 = vmatpush1.bf16.msra.mxu0 0
    %1269 = vmatprep.subr.bf16.mxu0 0
    %1270 = vmatpush1.bf16.msra.mxu0 0
    %1271 = vmatprep.subr.bf16.mxu0 0
    %1272 = vmatpush1.bf16.msra.mxu0 0
    %1273 = vmatprep.mubr.bf16.mxu0 0
    %1274 = vmatmul.mubr.bf16.gmra.mrb[0].mxu0 %v1239
    %v1275 = vpop.f32.mrb[0].mxu0
    %v1276 = vadd.f32 %v85, %v1275
    %v1277 = vpop.f32.mrb[0].mxu0
    %v1278 = vpop.f32.mrb[0].mxu0
    %v1279 = vpop.f32.mrb[0].mxu0
    %1280 = vdwg.mxu0
    %v1281 = vsel %vm325, %v1276, -inf
    %1282 = vmax.index.xlane.f32.xlu0 %v1281
    %v1283 = vpop.xlane.xlu0 %1282
    %1284 = vmax.xlane.f32.xlu0 %v1281
    %v1285 = vpop.xlane.xlu0 %1284
    %v1286 = vsub.f32 %v1276, %v1285
    %v1287 = vmul.f32 %v1286, 1.442695
    %v1288 = vpow.pop %v1287
    %v1289 = vsel %vm325, %v1288, 0.0
    %1290 = vadd.xlane.f32.xlu0 %v1289
    %v1291 = vpop.xlane.xlu0 %1290
    %v1292 = vlog2.pop %v1291
    %v1293 = vmul.f32 %v1292, 0.6931472
    %v1294 = vadd.f32 %v1293, %v1285
    %v1295 = vsub.f32 %v1276, %v1294
    %vm1296 = vcmp.eq.s32.totalorder %v67, %v1283
    %v1297 = vsel %vm1296, 1, 0
    %v1298 = vcvt.s32.f32 %v1297
    %v1299 = vpack.c.bf16 %v1298, %v1298
    %1300 = vmatprep.subr.bf16.mxu0 %v106
    %1301 = vmatpush1.bf16.msra.mxu0 %v105
    %1302 = vmatprep.subr.bf16.mxu0 %v108
    %1303 = vmatpush1.bf16.msra.mxu0 %v107
    %1304 = vmatprep.subr.bf16.mxu0 0
    %1305 = vmatpush1.bf16.msra.mxu0 0
    %1306 = vmatprep.subr.bf16.mxu0 0
    %1307 = vmatpush1.bf16.msra.mxu0 0
    %1308 = vmatprep.subr.bf16.mxu0 0
    %1309 = vmatpush1.bf16.msra.mxu0 0
    %1310 = vmatprep.subr.bf16.mxu0 0
    %1311 = vmatpush1.bf16.msra.mxu0 0
    %1312 = vmatprep.subr.bf16.mxu0 0
    %1313 = vmatpush1.bf16.msra.mxu0 0
    %1314 = vmatprep.subr.bf16.mxu0 0
    %1315 = vmatpush1.bf16.msra.mxu0 0
    %1316 = vmatprep.subr.bf16.mxu0 0
    %1317 = vmatpush1.bf16.msra.mxu0 0
    %1318 = vmatprep.subr.bf16.mxu0 0
    %1319 = vmatpush1.bf16.msra.mxu0 0
    %1320 = vmatprep.subr.bf16.mxu0 0
    %1321 = vmatpush1.bf16.msra.mxu0 0
    %1322 = vmatprep.subr.bf16.mxu0 0
    %1323 = vmatpush1.bf16.msra.mxu0 0
    %1324 = vmatprep.subr.bf16.mxu0 0
    %1325 = vmatpush1.bf16.msra.mxu0 0
    %1326 = vmatprep.subr.bf16.mxu0 0
    %1327 = vmatpush1.bf16.msra.mxu0 0
    %1328 = vmatprep.subr.bf16.mxu0 0
    %1329 = vmatpush1.bf16.msra.mxu0 0
    %1330 = vmatprep.subr.bf16.mxu0 0
    %1331 = vmatpush1.bf16.msra.mxu0 0
    %1332 = vmatprep.mubr.bf16.mxu0 0
    %1333 = vmatmul.mubr.bf16.gmra.mrb[0].mxu0 %v1239
    %v1334 = vpop.f32.mrb[0].mxu0
    %v1335 = vadd.f32 0.0, %v1334
    %v1336 = vpop.f32.mrb[0].mxu0
    %v1337 = vadd.f32 0.0, %v1336
    %v1338 = vpop.f32.mrb[0].mxu0
    %v1339 = vpop.f32.mrb[0].mxu0
    %1340 = vdwg.mxu0
    %v1342 = vsel %vm113, %v1299, 0
    %1344 = vmatprep.subr.bf16.mxu0 %v171
    %1345 = vmatpush1.bf16.msra.mxu0 %v170
    %1346 = vmatprep.subr.bf16.mxu0 %v173
    %1347 = vmatpush1.bf16.msra.mxu0 %v172
    %1348 = vmatprep.subr.bf16.mxu0 0
    %1349 = vmatpush1.bf16.msra.mxu0 0
    %1350 = vmatprep.subr.bf16.mxu0 0
    %1351 = vmatpush1.bf16.msra.mxu0 0
    %1352 = vmatprep.subr.bf16.mxu0 0
    %1353 = vmatpush1.bf16.msra.mxu0 0
    %1354 = vmatprep.subr.bf16.mxu0 0
    %1355 = vmatpush1.bf16.msra.mxu0 0
    %1356 = vmatprep.subr.bf16.mxu0 0
    %1357 = vmatpush1.bf16.msra.mxu0 0
    %1358 = vmatprep.subr.bf16.mxu0 0
    %1359 = vmatpush1.bf16.msra.mxu0 0
    %1360 = vmatprep.subr.bf16.mxu0 0
    %1361 = vmatpush1.bf16.msra.mxu0 0
    %1362 = vmatprep.subr.bf16.mxu0 0
    %1363 = vmatpush1.bf16.msra.mxu0 0
    %1364 = vmatprep.subr.bf16.mxu0 0
    %1365 = vmatpush1.bf16.msra.mxu0 0
    %1366 = vmatprep.subr.bf16.mxu0 0
    %1367 = vmatpush1.bf16.msra.mxu0 0
    %1368 = vmatprep.subr.bf16.mxu0 0
    %1369 = vmatpush1.bf16.msra.mxu0 0
    %1370 = vmatprep.subr.bf16.mxu0 0
    %1371 = vmatpush1.bf16.msra.mxu0 0
    %1372 = vmatprep.subr.bf16.mxu0 0
    %1373 = vmatpush1.bf16.msra.mxu0 0
    %1374 = vmatprep.subr.bf16.mxu0 0
    %1375 = vmatpush1.bf16.msra.mxu0 0
    %1376 = vmatprep.mubr.bf16.mxu0 0
    %1377 = vmatmul.mubr.bf16.gmra.mrb[0].mxu0 %v1342
    %v1378 = vpop.f32.mrb[0].mxu0
    %v1379 = vadd.f32 %v1335, %v1378
    %v1380 = vpop.f32.mrb[0].mxu0
    %v1381 = vadd.f32 %v1337, %v1380
    %v1382 = vpop.f32.mrb[0].mxu0
    %v1383 = vpop.f32.mrb[0].mxu0
    %1384 = vdwg.mxu0
    %1386 = vrot.lane.b32.xlu0 %v1379, 32
    %v1387 = vpop.permute.xlu0 %1386
    %v1389 = vadd.f32 %v1379, %v1387
    %v1390 = vxor.u32 %v1389, 2147483648
    %v1391 = vmul.f32 %v1390, 1.442695
    %v1392 = vpow.pop %v1391
    %v1393 = vadd.f32 %v1392, 1.0
    %v1394 = vrcp.pop %v1393
    %v1395 = vmul.f32 1.0, %v1394
    %1397 = vrot.lane.b32.xlu0 %v1381, 32
    %v1398 = vpop.permute.xlu0 %1397
    %v1400 = vadd.f32 %v1379, %v1398
    %v1401 = vxor.u32 %v1400, 2147483648
    %v1402 = vmul.f32 %v1401, 1.442695
    %v1403 = vpow.pop %v1402
    %v1404 = vadd.f32 %v1403, 1.0
    %v1405 = vrcp.pop %v1404
    %v1406 = vmul.f32 1.0, %v1405
    %1407 = vrot.lane.b32.xlu0 %v1381, 96
    %v1408 = vpop.permute.xlu0 %1407
    %v1410 = vmul.f32 %v1395, %v1408
    %1412 = vrot.lane.b32.xlu0 %v1410, 64
    %v1413 = vpop.permute.xlu0 %1412
    %v1415 = vadd.f32 %v1379, %v1413
    %v1416 = vtanh.pop %v1415
    %v1417 = vsub.f32 1.0, %v1406
    %1419 = vrot.lane.b32.xlu0 %v1416, 96
    %v1420 = vpop.permute.xlu0 %1419
    %v1422 = vmul.f32 %v1417, %v1420
    %v1423 = vmul.f32 %v1406, %v1233
    %v1424 = vadd.f32 %v1422, %v1423
    %v1425 = vpack.c.bf16 %v1424, %v1424
    %1427 = vrot.lane.b32.xlu0 %v1425, 96
    %v1428 = vpop.permute.xlu0 %1427
    %v1430 = vsel %vm113, %v1428, 0
    %1432 = vmatprep.subr.bf16.mxu0 0
    %1433 = vmatpush1.bf16.msra.mxu0 %v278
    %1434 = vmatprep.subr.bf16.mxu0 0
    %1435 = vmatpush1.bf16.msra.mxu0 %v279
    %1436 = vmatprep.subr.bf16.mxu0 0
    %1437 = vmatpush1.bf16.msra.mxu0 0
    %1438 = vmatprep.subr.bf16.mxu0 0
    %1439 = vmatpush1.bf16.msra.mxu0 0
    %1440 = vmatprep.subr.bf16.mxu0 0
    %1441 = vmatpush1.bf16.msra.mxu0 0
    %1442 = vmatprep.subr.bf16.mxu0 0
    %1443 = vmatpush1.bf16.msra.mxu0 0
    %1444 = vmatprep.subr.bf16.mxu0 0
    %1445 = vmatpush1.bf16.msra.mxu0 0
    %1446 = vmatprep.subr.bf16.mxu0 0
    %1447 = vmatpush1.bf16.msra.mxu0 0
    %1448 = vmatprep.subr.bf16.mxu0 0
    %1449 = vmatpush1.bf16.msra.mxu0 0
    %1450 = vmatprep.subr.bf16.mxu0 0
    %1451 = vmatpush1.bf16.msra.mxu0 0
    %1452 = vmatprep.subr.bf16.mxu0 0
    %1453 = vmatpush1.bf16.msra.mxu0 0
    %1454 = vmatprep.subr.bf16.mxu0 0
    %1455 = vmatpush1.bf16.msra.mxu0 0
    %1456 = vmatprep.subr.bf16.mxu0 0
    %1457 = vmatpush1.bf16.msra.mxu0 0
    %1458 = vmatprep.subr.bf16.mxu0 0
    %1459 = vmatpush1.bf16.msra.mxu0 0
    %1460 = vmatprep.subr.bf16.mxu0 0
    %1461 = vmatpush1.bf16.msra.mxu0 0
    %1462 = vmatprep.subr.bf16.mxu0 0
    %1463 = vmatpush1.bf16.msra.mxu0 0
    %1464 = vmatprep.mubr.bf16.mxu0 0
    %1465 = vmatmul.mubr.bf16.gmra.mrb[0].mxu0 %v1430
    %v1466 = vpop.f32.mrb[0].mxu0
    %v1467 = vadd.f32 %v85, %v1466
    %v1468 = vpop.f32.mrb[0].mxu0
    %v1469 = vpop.f32.mrb[0].mxu0
    %v1470 = vpop.f32.mrb[0].mxu0
    %1471 = vdwg.mxu0
    %v1472 = vsel %vm325, %v1467, -inf
    %1473 = vmax.index.xlane.f32.xlu0 %v1472
    %v1474 = vpop.xlane.xlu0 %1473
    %1475 = vmax.xlane.f32.xlu0 %v1472
    %v1476 = vpop.xlane.xlu0 %1475
    %v1477 = vsub.f32 %v1467, %v1476
    %v1478 = vmul.f32 %v1477, 1.442695
    %v1479 = vpow.pop %v1478
    %v1480 = vsel %vm325, %v1479, 0.0
    %1481 = vadd.xlane.f32.xlu0 %v1480
    %v1482 = vpop.xlane.xlu0 %1481
    %v1483 = vlog2.pop %v1482
    %v1484 = vmul.f32 %v1483, 0.6931472
    %v1485 = vadd.f32 %v1484, %v1476
    %v1486 = vsub.f32 %v1467, %v1485
    %vm1487 = vcmp.eq.s32.totalorder %v67, %v1474
    %v1488 = vsel %vm1487, 1, 0
    %v1489 = vcvt.s32.f32 %v1488
    %v1490 = vpack.c.bf16 %v1489, %v1489
    %1491 = vmatprep.subr.bf16.mxu0 %v106
    %1492 = vmatpush1.bf16.msra.mxu0 %v105
    %1493 = vmatprep.subr.bf16.mxu0 %v108
    %1494 = vmatpush1.bf16.msra.mxu0 %v107
    %1495 = vmatprep.subr.bf16.mxu0 0
    %1496 = vmatpush1.bf16.msra.mxu0 0
    %1497 = vmatprep.subr.bf16.mxu0 0
    %1498 = vmatpush1.bf16.msra.mxu0 0
    %1499 = vmatprep.subr.bf16.mxu0 0
    %1500 = vmatpush1.bf16.msra.mxu0 0
    %1501 = vmatprep.subr.bf16.mxu0 0
    %1502 = vmatpush1.bf16.msra.mxu0 0
    %1503 = vmatprep.subr.bf16.mxu0 0
    %1504 = vmatpush1.bf16.msra.mxu0 0
    %1505 = vmatprep.subr.bf16.mxu0 0
    %1506 = vmatpush1.bf16.msra.mxu0 0
    %1507 = vmatprep.subr.bf16.mxu0 0
    %1508 = vmatpush1.bf16.msra.mxu0 0
    %1509 = vmatprep.subr.bf16.mxu0 0
    %1510 = vmatpush1.bf16.msra.mxu0 0
    %1511 = vmatprep.subr.bf16.mxu0 0
    %1512 = vmatpush1.bf16.msra.mxu0 0
    %1513 = vmatprep.subr.bf16.mxu0 0
    %1514 = vmatpush1.bf16.msra.mxu0 0
    %1515 = vmatprep.subr.bf16.mxu0 0
    %1516 = vmatpush1.bf16.msra.mxu0 0
    %1517 = vmatprep.subr.bf16.mxu0 0
    %1518 = vmatpush1.bf16.msra.mxu0 0
    %1519 = vmatprep.subr.bf16.mxu0 0
    %1520 = vmatpush1.bf16.msra.mxu0 0
    %1521 = vmatprep.subr.bf16.mxu0 0
    %1522 = vmatpush1.bf16.msra.mxu0 0
    %1523 = vmatprep.mubr.bf16.mxu0 0
    %1524 = vmatmul.mubr.bf16.gmra.mrb[0].mxu0 %v1430
    %v1525 = vpop.f32.mrb[0].mxu0
    %v1526 = vadd.f32 0.0, %v1525
    %v1527 = vpop.f32.mrb[0].mxu0
    %v1528 = vadd.f32 0.0, %v1527
    %v1529 = vpop.f32.mrb[0].mxu0
    %v1530 = vpop.f32.mrb[0].mxu0
    %1531 = vdwg.mxu0
    %v1533 = vsel %vm113, %v1490, 0
    %1535 = vmatprep.subr.bf16.mxu0 %v171
    %1536 = vmatpush1.bf16.msra.mxu0 %v170
    %1537 = vmatprep.subr.bf16.mxu0 %v173
    %1538 = vmatpush1.bf16.msra.mxu0 %v172
    %1539 = vmatprep.subr.bf16.mxu0 0
    %1540 = vmatpush1.bf16.msra.mxu0 0
    %1541 = vmatprep.subr.bf16.mxu0 0
    %1542 = vmatpush1.bf16.msra.mxu0 0
    %1543 = vmatprep.subr.bf16.mxu0 0
    %1544 = vmatpush1.bf16.msra.mxu0 0
    %1545 = vmatprep.subr.bf16.mxu0 0
    %1546 = vmatpush1.bf16.msra.mxu0 0
    %1547 = vmatprep.subr.bf16.mxu0 0
    %1548 = vmatpush1.bf16.msra.mxu0 0
    %1549 = vmatprep.subr.bf16.mxu0 0
    %1550 = vmatpush1.bf16.msra.mxu0 0
    %1551 = vmatprep.subr.bf16.mxu0 0
    %1552 = vmatpush1.bf16.msra.mxu0 0
    %1553 = vmatprep.subr.bf16.mxu0 0
    %1554 = vmatpush1.bf16.msra.mxu0 0
    %1555 = vmatprep.subr.bf16.mxu0 0
    %1556 = vmatpush1.bf16.msra.mxu0 0
    %1557 = vmatprep.subr.bf16.mxu0 0
    %1558 = vmatpush1.bf16.msra.mxu0 0
    %1559 = vmatprep.subr.bf16.mxu0 0
    %1560 = vmatpush1.bf16.msra.mxu0 0
    %1561 = vmatprep.subr.bf16.mxu0 0
    %1562 = vmatpush1.bf16.msra.mxu0 0
    %1563 = vmatprep.subr.bf16.mxu0 0
    %1564 = vmatpush1.bf16.msra.mxu0 0
    %1565 = vmatprep.subr.bf16.mxu0 0
    %1566 = vmatpush1.bf16.msra.mxu0 0
    %1567 = vmatprep.mubr.bf16.mxu0 0
    %1568 = vmatmul.mubr.bf16.gmra.mrb[0].mxu0 %v1533
    %v1569 = vpop.f32.mrb[0].mxu0
    %v1570 = vadd.f32 %v1526, %v1569
    %v1571 = vpop.f32.mrb[0].mxu0
    %v1572 = vadd.f32 %v1528, %v1571
    %v1573 = vpop.f32.mrb[0].mxu0
    %v1574 = vpop.f32.mrb[0].mxu0
    %1575 = vdwg.mxu0
    %1577 = vrot.lane.b32.xlu0 %v1570, 32
    %v1578 = vpop.permute.xlu0 %1577
    %v1580 = vadd.f32 %v1570, %v1578
    %v1581 = vxor.u32 %v1580, 2147483648
    %v1582 = vmul.f32 %v1581, 1.442695
    %v1583 = vpow.pop %v1582
    %v1584 = vadd.f32 %v1583, 1.0
    %v1585 = vrcp.pop %v1584
    %v1586 = vmul.f32 1.0, %v1585
    %1588 = vrot.lane.b32.xlu0 %v1572, 32
    %v1589 = vpop.permute.xlu0 %1588
    %v1591 = vadd.f32 %v1570, %v1589
    %v1592 = vxor.u32 %v1591, 2147483648
    %v1593 = vmul.f32 %v1592, 1.442695
    %v1594 = vpow.pop %v1593
    %v1595 = vadd.f32 %v1594, 1.0
    %v1596 = vrcp.pop %v1595
    %v1597 = vmul.f32 1.0, %v1596
    %1598 = vrot.lane.b32.xlu0 %v1572, 96
    %v1599 = vpop.permute.xlu0 %1598
    %v1601 = vmul.f32 %v1586, %v1599
    %1603 = vrot.lane.b32.xlu0 %v1601, 64
    %v1604 = vpop.permute.xlu0 %1603
    %v1606 = vadd.f32 %v1570, %v1604
    %v1607 = vtanh.pop %v1606
    %v1608 = vsub.f32 1.0, %v1597
    %1610 = vrot.lane.b32.xlu0 %v1607, 96
    %v1611 = vpop.permute.xlu0 %1610
    %v1613 = vmul.f32 %v1608, %v1611
    %v1614 = vmul.f32 %v1597, %v1424
    %v1615 = vadd.f32 %v1613, %v1614
    %v1616 = vpack.c.bf16 %v1615, %v1615
    %1618 = vrot.lane.b32.xlu0 %v1616, 96
    %v1619 = vpop.permute.xlu0 %1618
    %v1621 = vsel %vm113, %v1619, 0
    %1623 = vmatprep.subr.bf16.mxu0 0
    %1624 = vmatpush1.bf16.msra.mxu0 %v278
    %1625 = vmatprep.subr.bf16.mxu0 0
    %1626 = vmatpush1.bf16.msra.mxu0 %v279
    %1627 = vmatprep.subr.bf16.mxu0 0
    %1628 = vmatpush1.bf16.msra.mxu0 0
    %1629 = vmatprep.subr.bf16.mxu0 0
    %1630 = vmatpush1.bf16.msra.mxu0 0
    %1631 = vmatprep.subr.bf16.mxu0 0
    %1632 = vmatpush1.bf16.msra.mxu0 0
    %1633 = vmatprep.subr.bf16.mxu0 0
    %1634 = vmatpush1.bf16.msra.mxu0 0
    %1635 = vmatprep.subr.bf16.mxu0 0
    %1636 = vmatpush1.bf16.msra.mxu0 0
    %1637 = vmatprep.subr.bf16.mxu0 0
    %1638 = vmatpush1.bf16.msra.mxu0 0
    %1639 = vmatprep.subr.bf16.mxu0 0
    %1640 = vmatpush1.bf16.msra.mxu0 0
    %1641 = vmatprep.subr.bf16.mxu0 0
    %1642 = vmatpush1.bf16.msra.mxu0 0
    %1643 = vmatprep.subr.bf16.mxu0 0
    %1644 = vmatpush1.bf16.msra.mxu0 0
    %1645 = vmatprep.subr.bf16.mxu0 0
    %1646 = vmatpush1.bf16.msra.mxu0 0
    %1647 = vmatprep.subr.bf16.mxu0 0
    %1648 = vmatpush1.bf16.msra.mxu0 0
    %1649 = vmatprep.subr.bf16.mxu0 0
    %1650 = vmatpush1.bf16.msra.mxu0 0
    %1651 = vmatprep.subr.bf16.mxu0 0
    %1652 = vmatpush1.bf16.msra.mxu0 0
    %1653 = vmatprep.subr.bf16.mxu0 0
    %1654 = vmatpush1.bf16.msra.mxu0 0
    %1655 = vmatprep.mubr.bf16.mxu0 0
    %1656 = vmatmul.mubr.bf16.gmra.mrb[0].mxu0 %v1621
    %v1657 = vpop.f32.mrb[0].mxu0
    %v1658 = vadd.f32 %v85, %v1657
    %v1659 = vpop.f32.mrb[0].mxu0
    %v1660 = vpop.f32.mrb[0].mxu0
    %v1661 = vpop.f32.mrb[0].mxu0
    %1662 = vdwg.mxu0
    %v1663 = vsel %vm325, %v1658, -inf
    %1664 = vmax.xlane.f32.xlu0 %v1663
    %v1665 = vpop.xlane.xlu0 %1664
    %v1666 = vsub.f32 %v1658, %v1665
    %v1667 = vmul.f32 %v1666, 1.442695
    %v1668 = vpow.pop %v1667
    %v1669 = vsel %vm325, %v1668, 0.0
    %1670 = vadd.xlane.f32.xlu0 %v1669
    %v1671 = vpop.xlane.xlu0 %1670
    %v1672 = vlog2.pop %v1671
    %v1673 = vmul.f32 %v1672, 0.6931472
    %v1674 = vadd.f32 %v1673, %v1665
    %v1675 = vsub.f32 %v1658, %v1674
    %1677 = vrot.lane.b32.xlu0 %v531, 32
    %v1678 = vpop.permute.xlu0 %1677
    %1681 = vrot.lane.b32.xlu0 %v722, 64
    %v1682 = vpop.permute.xlu0 %1681
    %1685 = vrot.lane.b32.xlu0 %v913, 96
    %v1686 = vpop.permute.xlu0 %1685
    %1689 = vrot.lane.b32.xlu0 %v1295, 32
    %v1690 = vpop.permute.xlu0 %1689
    %1693 = vrot.lane.b32.xlu0 %v1486, 64
    %v1694 = vpop.permute.xlu0 %1693
    %1697 = vrot.lane.b32.xlu0 %v1675, 96
    %v1698 = vpop.permute.xlu0 %1697
    %v1700 = vsel %vm113, %v340, %v1678
    %vm1701 = vcmask 523264
    %v1702 = vsel %vm1701, %v1700, %v1682
    %vm1703 = vcmask 785408
    %v1704 = vsel %vm1703, %v1702, %v1686
    %v1705 = vsel %vm113, %v1104, %v1690
    %v1706 = vsel %vm1701, %v1705, %v1694
    %v1707 = vsel %vm1703, %v1706, %v1698
    %v1710 = vcombine.low %v1704, %v1707
    %v1712 = vunpack.c.l.s4 1983009808
    %v1713 = vunpack.c.0.s8 %v1712
    %v1714 = vlaneseq
    %v1715 = vshrl.u32 %v1714, 7
    %v1716 = vsub.s32 %v1713, %v1715
    %v1717 = vrot.slane %v1710, %v1716
    %1719 = vst [vmem:[#allocation8] sm:$0xf] %v1717
    %1721 = vrot.lane.b32.xlu0 %v1615, 96
    %v1722 = vpop.permute.xlu0 %1721
    %1724 = vst.msk [vmem:[#allocation9] sm:$0x3] %vm325, %v1722
    // Predicated region
    $region34: #{tpu_custom_call.1} parent=1 // pred_check
      _
    $region35: #{tpu_custom_call.1} parent=1 // pred_check_branch
      %1726 = sbr.rel (0) target = $region37
    $region36: #{tpu_custom_call.1} parent=1 // pred_region
      %s1728 = ssub.s32 64, 64
      %1729 = vsyncadd [#allocation4], %s1728
      %s1731 = sshll.u32 [#allocation8], 4
      %s1732 = int_to_ptr.vmem [resolvable:$true] %s1731
      %1734 = dma.vmem_to_hbm [thread:$0]  %s1732, 64, %s5, [#allocation4]
    $region37: #{tpu_custom_call.1} parent=1 // pred_fallthru
      _
    // Predicated region
    $region38: #{tpu_custom_call.1} parent=1 // pred_check
      _
    $region39: #{tpu_custom_call.1} parent=1 // pred_check_branch
      %1736 = sbr.rel (0) target = $region41
    $region40: #{tpu_custom_call.1} parent=1 // pred_region
      %s1738 = ssub.s32 32, 32
      %1739 = vsyncadd [#allocation10], %s1738
      %s1741 = sshll.u32 [#allocation9], 4
      %s1742 = int_to_ptr.vmem [resolvable:$true] %s1741
      %1744 = dma.vmem_to_hbm [thread:$0]  %s1742, 32, %s6, [#allocation10]
    $region41: #{tpu_custom_call.1} parent=1 // pred_fallthru
      _
    // Predicated region
    $region42: #{tpu_custom_call.1} parent=1 // pred_check
      _
    $region43: #{tpu_custom_call.1} parent=1 // pred_check_branch
      %1746 = sbr.rel (0) target = $region45
    $region44: #{tpu_custom_call.1} parent=1 // pred_region
      %1747 = dma.done [#allocation4], 64
    $region45: #{tpu_custom_call.1} parent=1 // pred_fallthru
      _
    // Predicated region
    $region46: #{tpu_custom_call.1} parent=1 // pred_check
      _
    $region47: #{tpu_custom_call.1} parent=1 // pred_check_branch
      %1749 = sbr.rel (0) target = $region49
    $region48: #{tpu_custom_call.1} parent=1 // pred_region
      %1750 = dma.done [#allocation10], 32
    $region49: #{tpu_custom_call.1} parent=1 // pred_fallthru
      _
    %1751 = vsyncpa [#allocation3], 1
    %1752 = vsyncpa [#allocation6], 1
    %1753 = vsyncpa [#allocation4], 1
    %1754 = vsyncpa [#allocation10], 1

</llo_original>
